<compile_context>
chip_gen: v5e
topology: v5e:2x2
jax: 0.10.0
libtpu: 0.0.40
codegen_flags: <defaults>
</compile_context>

<pallas_src>
import math
from functools import partial

import jax
import jax.numpy as jnp
from jax.experimental import pallas as pl
from jax.experimental.pallas import tpu as pltpu


VMEM_LIMIT = 32 * 1024 * 1024
_INV_SQRT2 = 1.0 / math.sqrt(2.0)


# ----------------------------- tiling helpers ------------------------------

def _pick_tile(dim, target, align):
    """Largest tile <= target that is a multiple of `align` and divides `dim`.
    Falls back to the full dimension (always a legal block)."""
    if dim <= target:
        return dim
    t = (target // align) * align
    while t >= align:
        if dim % t == 0:
            return t
        t -= align
    return dim


def _gelu_exact(x):
    # torch nn.GELU() default: exact erf-based GELU (computed in f32).
    return 0.5 * x * (1.0 + jax.lax.erf(x * _INV_SQRT2))


# ------------------------------ LayerNorm kernel ----------------------------

def _layernorm_kernel(x_ref, w_ref, b_ref, o_ref):
    # F.layer_norm semantics: biased variance, eps inside rsqrt. Stats in f32.
    x = x_ref[...].astype(jnp.float32)
    mu = jnp.mean(x, axis=-1, keepdims=True)
    var = jnp.mean(jnp.square(x - mu), axis=-1, keepdims=True)
    y = (x - mu) * jax.lax.rsqrt(var + 1e-5) * w_ref[...] + b_ref[...]
    o_ref[...] = y.astype(o_ref.dtype)


def layernorm(x, w, b, out_dtype=jnp.bfloat16):
    M, C = x.shape
    tm = _pick_tile(M, 256, 8)
    return pl.pallas_call(
        _layernorm_kernel,
        out_shape=jax.ShapeDtypeStruct((M, C), out_dtype),
        grid=(M // tm,),
        in_specs=[pl.BlockSpec((tm, C), lambda i: (i, 0)),
                  pl.BlockSpec((1, C), lambda i: (0, 0)),
                  pl.BlockSpec((1, C), lambda i: (0, 0))],
        out_specs=pl.BlockSpec((tm, C), lambda i: (i, 0)),
        compiler_params=pltpu.CompilerParams(
            dimension_semantics=("parallel",),
            vmem_limit_bytes=VMEM_LIMIT),
    )(x, w, b)


# --------------------- tiled Linear (bias / gelu / residual) ----------------

def _linear_kernel(x_ref, w_ref, b_ref, *rest, activation, has_residual):
    if has_residual:
        res_ref, out_ref, acc_ref = rest
    else:
        out_ref, acc_ref = rest

    k = pl.program_id(2)

    @pl.when(k == 0)
    def _():
        acc_ref[...] = jnp.zeros_like(acc_ref)

    acc_ref[...] += jnp.dot(x_ref[...].astype(jnp.bfloat16),
                            w_ref[...].astype(jnp.bfloat16),
                            preferred_element_type=jnp.float32)

    @pl.when(k == pl.num_programs(2) - 1)
    def _():
        y = acc_ref[...] + b_ref[...].astype(jnp.float32)
        if activation == "gelu":
            y = _gelu_exact(y)
        if has_residual:
            y = y + res_ref[...].astype(jnp.float32)
        out_ref[...] = y.astype(out_ref.dtype)


def linear(x, w, b, *, activation=None, residual=None, out_dtype=jnp.bfloat16):
    M, K = x.shape
    Kw, N = w.shape
    assert Kw == K
    tm = _pick_tile(M, 256, 8)
    tn = _pick_tile(N, 256, 128)
    tk = _pick_tile(K, 512, 128)
    has_res = residual is not None

    in_specs = [pl.BlockSpec((tm, tk), lambda i, j, k: (i, k)),
                pl.BlockSpec((tk, tn), lambda i, j, k: (k, j)),
                pl.BlockSpec((1, tn), lambda i, j, k: (0, j))]
    args = [x, w, b]
    if has_res:
        in_specs.append(pl.BlockSpec((tm, tn), lambda i, j, k: (i, j)))
        args.append(residual)

    kernel = partial(_linear_kernel, activation=activation,
                     has_residual=has_res)
    return pl.pallas_call(
        kernel,
        out_shape=jax.ShapeDtypeStruct((M, N), out_dtype),
        grid=(M // tm, N // tn, K // tk),
        in_specs=in_specs,
        out_specs=pl.BlockSpec((tm, tn), lambda i, j, k: (i, j)),
        scratch_shapes=[pltpu.VMEM((tm, tn), jnp.float32)],
        compiler_params=pltpu.CompilerParams(
            dimension_semantics=("parallel", "parallel", "arbitrary"),
            vmem_limit_bytes=VMEM_LIMIT),
    )(*args)


# ----------------------- flash-style causal attention -----------------------

def _flash_attn_kernel(q_ref, k_ref, v_ref, o_ref, m_sc, l_sc, acc_sc,
                       *, scale, tq, tkv):
    qi = pl.program_id(2)
    ki = pl.program_id(3)

    @pl.when(ki == 0)
    def _():
        m_sc[...] = jnp.full(m_sc.shape, -jnp.inf, jnp.float32)
        l_sc[...] = jnp.zeros_like(l_sc)
        acc_sc[...] = jnp.zeros_like(acc_sc)

    # Skip kv tiles that are entirely in the future (fully masked).
    @pl.when(ki * tkv <= qi * tq + (tq - 1))
    def _():
        # Fold 1/sqrt(hd) into q once per (small) tile instead of scaling the
        # (tq, tkv) score matrix.
        q = (q_ref[0, 0].astype(jnp.float32) * scale).astype(jnp.bfloat16)
        k = k_ref[0, 0]
        v = v_ref[0, 0]
        s = jax.lax.dot_general(q, k, (((1,), (1,)), ((), ())),
                                preferred_element_type=jnp.float32)
        # Per-tile causal mask (additive -inf equivalent).
        row = qi * tq + jax.lax.broadcasted_iota(jnp.int32, (tq, tkv), 0)
        col = ki * tkv + jax.lax.broadcasted_iota(jnp.int32, (tq, tkv), 1)
        s = jnp.where(col <= row, s, -1e30)

        m_prev = m_sc[...]
        m_new = jnp.maximum(m_prev, jnp.max(s, axis=-1, keepdims=True))
        alpha = jnp.exp(m_prev - m_new)
        p = jnp.exp(s - m_new)
        l_sc[...] = alpha * l_sc[...] + jnp.sum(p, axis=-1, keepdims=True)
        acc_sc[...] = alpha * acc_sc[...] + jnp.dot(
            p.astype(jnp.bfloat16), v, preferred_element_type=jnp.float32)
        m_sc[...] = m_new

    @pl.when(ki == pl.num_programs(3) - 1)
    def _():
        inv_l = pl.reciprocal(l_sc[...], approx=True)
        o_ref[0, 0] = (acc_sc[...] * inv_l).astype(o_ref.dtype)


def causal_attention(q, k, v):
    """q, k, v: (B, H, T, hd) bf16 -> (B, H, T, hd) bf16."""
    B, H, T, hd = q.shape
    tq = _pick_tile(T, 256, 8)
    tkv = _pick_tile(T, 256, 128)
    scale = 1.0 / math.sqrt(hd)

    q_spec = pl.BlockSpec((1, 1, tq, hd), lambda b, h, qi, ki: (b, h, qi, 0))
    kv_spec = pl.BlockSpec((1, 1, tkv, hd), lambda b, h, qi, ki: (b, h, ki, 0))
    kernel = partial(_flash_attn_kernel, scale=scale, tq=tq, tkv=tkv)

    return pl.pallas_call(
        kernel,
        out_shape=jax.ShapeDtypeStruct((B, H, T, hd), jnp.bfloat16),
        grid=(B, H, T // tq, T // tkv),
        in_specs=[q_spec, kv_spec, kv_spec],
        out_specs=pl.BlockSpec((1, 1, tq, hd), lambda b, h, qi, ki: (b, h, qi, 0)),
        scratch_shapes=[pltpu.VMEM((tq, 1), jnp.float32),
                        pltpu.VMEM((tq, 1), jnp.float32),
                        pltpu.VMEM((tq, hd), jnp.float32)],
        compiler_params=pltpu.CompilerParams(
            dimension_semantics=("parallel", "parallel", "parallel", "arbitrary"),
            vmem_limit_bytes=VMEM_LIMIT),
    )(q, k, v)


# ----------------------------- lm_head (tied wte) ---------------------------

def _lm_head_kernel(h_ref, wte_ref, out_ref):
    # logits tile = h @ wte[tile].T  (bf16 inputs, f32 accumulation/output)
    out_ref[...] = jax.lax.dot_general(
        h_ref[...], wte_ref[...], (((1,), (1,)), ((), ())),
        preferred_element_type=jnp.float32)


def lm_head(h, wte):
    """h: (B, C) bf16 (already LayerNorm'd); wte: (V, C) bf16 -> (B, V) f32."""
    B, C = h.shape
    V, _ = wte.shape
    tv = _pick_tile(V, 2048, 128)
    return pl.pallas_call(
        _lm_head_kernel,
        out_shape=jax.ShapeDtypeStruct((B, V), jnp.float32),
        grid=(V // tv,),
        in_specs=[pl.BlockSpec((B, C), lambda j: (0, 0)),
                  pl.BlockSpec((tv, C), lambda j: (j, 0))],
        out_specs=pl.BlockSpec((B, tv), lambda j: (0, j)),
        compiler_params=pltpu.CompilerParams(
            dimension_semantics=("parallel",),
            vmem_limit_bytes=VMEM_LIMIT),
    )(h, wte)


# ------------------------------ transformer block ---------------------------

def gpt_block(x2d, blk, B, T, n_head):
    """x2d: (B*T, C) f32 residual stream."""
    M, C = x2d.shape
    hd = C // n_head

    # ---- x + attn(ln_1(x)) ----
    h1 = layernorm(x2d, blk['ln1_w'], blk['ln1_b'])               # bf16
    qkv = linear(h1, blk['w_attn'], blk['b_attn'])                # (M, 3C) bf16
    qkv = qkv.reshape(B, T, 3 * C)
    q = qkv[:, :, 0:C].reshape(B, T, n_head, hd).transpose(0, 2, 1, 3)
    k = qkv[:, :, C:2 * C].reshape(B, T, n_head, hd).transpose(0, 2, 1, 3)
    v = qkv[:, :, 2 * C:3 * C].reshape(B, T, n_head, hd).transpose(0, 2, 1, 3)
    y = causal_attention(q, k, v)                                 # (B,H,T,hd)
    y = y.transpose(0, 2, 1, 3).reshape(M, C)                     # (M, C) bf16
    x2d = linear(y, blk['w_attn_proj'], blk['b_attn_proj'],
                 residual=x2d, out_dtype=jnp.float32)

    # ---- x + mlp(ln_2(x)) ----
    h2 = layernorm(x2d, blk['ln2_w'], blk['ln2_b'])               # bf16
    a = linear(h2, blk['w_fc'], blk['b_fc'], activation="gelu")   # (M, 4C) bf16
    x2d = linear(a, blk['w_mlp_proj'], blk['b_mlp_proj'],
                 residual=x2d, out_dtype=jnp.float32)
    return x2d


# ------------------------------ full forward --------------------------------

def gpt_forward(idx, params, config):
    b, t = idx.shape
    C = config['n_embd']
    assert t <= config['block_size']
    tok_emb = jnp.take(params['wte'], idx, axis=0).astype(jnp.float32)  # gather glue
    pos_emb = params['wpe'][:t].astype(jnp.float32)                     # (t, C)
    x = (tok_emb + pos_emb[None]).reshape(b * t, C)   # dropout p=0 -> identity
    for blk in params['blocks']:
        x = gpt_block(x, blk, b, t, config['n_head'])
    x_last = x.reshape(b, t, C)[:, -1, :]             # inference path: last token
    h = layernorm(x_last, params['ln_f_w'], params['ln_f_b'])
    logits = lm_head(h, params['wte'])                # tied lm_head weight
    # TODO(synk): training path (targets + cross-entropy loss) not implemented.
    return logits[:, None, :]                         # (b, 1, vocab), loss = None


# ------------------------------ parameter init ------------------------------

def init_params(key, config):
    V, Tmax = config['vocab_size'], config['block_size']
    L, C = config['n_layer'], config['n_embd']
    std = 0.02
    proj_std = 0.02 / math.sqrt(2 * L)
    keys = jax.random.split(key, 2 + 4 * L)
    # Weights stored in bf16 (native MXU input); biases / LN params in f32.
    wte = (jax.random.normal(keys[0], (V, C)) * std).astype(jnp.bfloat16)
    wpe = (jax.random.normal(keys[1], (Tmax, C)) * std).astype(jnp.bfloat16)
    blocks = []
    for l in range(L):
        k0, k1, k2, k3 = keys[2 + 4 * l: 2 + 4 * l + 4]
        blocks.append(dict(
            ln1_w=jnp.ones((1, C), jnp.float32),
            ln1_b=jnp.zeros((1, C), jnp.float32),
            w_attn=(jax.random.normal(k0, (C, 3 * C)) * std).astype(jnp.bfloat16),
            b_attn=jnp.zeros((1, 3 * C), jnp.float32),
            w_attn_proj=(jax.random.normal(k1, (C, C)) * proj_std).astype(jnp.bfloat16),
            b_attn_proj=jnp.zeros((1, C), jnp.float32),
            ln2_w=jnp.ones((1, C), jnp.float32),
            ln2_b=jnp.zeros((1, C), jnp.float32),
            w_fc=(jax.random.normal(k2, (C, 4 * C)) * std).astype(jnp.bfloat16),
            b_fc=jnp.zeros((1, 4 * C), jnp.float32),
            w_mlp_proj=(jax.random.normal(k3, (4 * C, C)) * proj_std).astype(jnp.bfloat16),
            b_mlp_proj=jnp.zeros((1, C), jnp.float32),
        ))
    return dict(wte=wte, wpe=wpe, blocks=blocks,
                ln_f_w=jnp.ones((1, C), jnp.float32),
                ln_f_b=jnp.zeros((1, C), jnp.float32))


# ----------------------------------- main -----------------------------------

if __name__ == "__main__":
    config = dict(block_size=16, vocab_size=256, n_layer=2, n_head=4,
                  n_embd=32, dropout=0.0, bias=True)
    key = jax.random.PRNGKey(0)
    pkey, ikey = jax.random.split(key)
    params = init_params(pkey, config)

    B, T = 2, 8
    idx = jax.random.randint(ikey, (B, T), 0, config['vocab_size'], dtype=jnp.int32)

    fwd = jax.jit(partial(gpt_forward, config=config))
    logits = fwd(idx, params)
    logits = jax.block_until_ready(logits)
    assert logits.shape == (B, 1, config['vocab_size'])
    assert bool(jnp.all(jnp.isfinite(logits)))
    print("KERNEL_OK")
</pallas_src>

<mosaic_0001>
module attributes {stable_mosaic.version = 11 : i64} {
  func.func @_layernorm_kernel(%arg0: i32, %arg1: memref<16x32xf32, #tpu.memory_space<vmem>>, %arg2: memref<1x32xf32, #tpu.memory_space<vmem>>, %arg3: memref<1x32xf32, #tpu.memory_space<vmem>>, %arg4: memref<16x32xbf16, #tpu.memory_space<vmem>>) attributes {dimension_semantics = [#tpu.dimension_semantics<parallel>], iteration_bounds = array<i64: 1>, scalar_prefetch = 0 : i64, scratch_operands = 0 : i64, tpu.core_type = #tpu.core_type<tc>, window_params = [{transform_indices = @transform_0, window_bounds = array<i64: 16, 32>}, {pipeline_mode = #tpu.pipeline_mode<synchronous>, transform_indices = @transform_1, window_bounds = array<i64: 1, 32>}, {pipeline_mode = #tpu.pipeline_mode<synchronous>, transform_indices = @transform_2, window_bounds = array<i64: 1, 32>}, {transform_indices = @transform_3, window_bounds = array<i64: 16, 32>}]} {
    %c0 = arith.constant 0 : index
    %c0_0 = arith.constant 0 : index
    %0 = vector.load %arg1[%c0, %c0_0] : memref<16x32xf32, #tpu.memory_space<vmem>>, vector<16x32xf32>
    %cst = arith.constant dense<0.000000e+00> : vector<16xf32>
    %1 = vector.multi_reduction <add>, %0, %cst [1] : vector<16x32xf32> to vector<16xf32>
    %2 = vector.shape_cast %1 : vector<16xf32> to vector<16x1xf32>
    %cst_1 = arith.constant 3.200000e+01 : f32
    %3 = vector.broadcast %cst_1 : f32 to vector<16x1xf32>
    %4 = arith.divf %2, %3 : vector<16x1xf32>
    %5 = vector.broadcast %4 : vector<16x1xf32> to vector<16x32xf32>
    %6 = arith.subf %0, %5 : vector<16x32xf32>
    %7 = arith.mulf %6, %6 : vector<16x32xf32>
    %cst_2 = arith.constant dense<0.000000e+00> : vector<16xf32>
    %8 = vector.multi_reduction <add>, %7, %cst_2 [1] : vector<16x32xf32> to vector<16xf32>
    %9 = vector.shape_cast %8 : vector<16xf32> to vector<16x1xf32>
    %cst_3 = arith.constant 3.200000e+01 : f32
    %10 = vector.broadcast %cst_3 : f32 to vector<16x1xf32>
    %11 = arith.divf %9, %10 : vector<16x1xf32>
    %12 = vector.broadcast %4 : vector<16x1xf32> to vector<16x32xf32>
    %13 = arith.subf %0, %12 : vector<16x32xf32>
    %cst_4 = arith.constant 9.99999974E-6 : f32
    %14 = vector.broadcast %cst_4 : f32 to vector<16x1xf32>
    %15 = arith.addf %11, %14 : vector<16x1xf32>
    %16 = math.rsqrt %15 : vector<16x1xf32>
    %17 = vector.broadcast %16 : vector<16x1xf32> to vector<16x32xf32>
    %18 = arith.mulf %13, %17 : vector<16x32xf32>
    %c0_5 = arith.constant 0 : index
    %c0_6 = arith.constant 0 : index
    %19 = vector.load %arg2[%c0_5, %c0_6] : memref<1x32xf32, #tpu.memory_space<vmem>>, vector<1x32xf32>
    %20 = vector.broadcast %19 : vector<1x32xf32> to vector<16x32xf32>
    %21 = arith.mulf %18, %20 : vector<16x32xf32>
    %c0_7 = arith.constant 0 : index
    %c0_8 = arith.constant 0 : index
    %22 = vector.load %arg3[%c0_7, %c0_8] : memref<1x32xf32, #tpu.memory_space<vmem>>, vector<1x32xf32>
    %23 = vector.broadcast %22 : vector<1x32xf32> to vector<16x32xf32>
    %24 = arith.addf %21, %23 : vector<16x32xf32>
    %25 = arith.truncf %24 : vector<16x32xf32> to vector<16x32xbf16>
    %c0_9 = arith.constant 0 : index
    %c0_10 = arith.constant 0 : index
    %26 = vector.load %arg4[%c0_9, %c0_10] : memref<16x32xbf16, #tpu.memory_space<vmem>>, vector<16x32xbf16>
    tpu.vector_store %arg4[%c0_9, %c0_10], %25 {strides = array<i32>} : memref<16x32xbf16, #tpu.memory_space<vmem>>, vector<16x32xbf16>,
    return
  }
  func.func @transform_0(%arg0: i32) -> (i32, i32) {
    %c0_i32 = arith.constant 0 : i32
    %c0_i32_0 = arith.constant 0 : i32
    return %arg0, %c0_i32 : i32, i32
  }
  func.func @transform_1(%arg0: i32) -> (i32, i32) {
    %c0_i32 = arith.constant 0 : i32
    %c0_i32_0 = arith.constant 0 : i32
    %c0_i32_1 = arith.constant 0 : i32
    return %c0_i32, %c0_i32_0 : i32, i32
  }
  func.func @transform_2(%arg0: i32) -> (i32, i32) {
    %c0_i32 = arith.constant 0 : i32
    %c0_i32_0 = arith.constant 0 : i32
    %c0_i32_1 = arith.constant 0 : i32
    return %c0_i32, %c0_i32_0 : i32, i32
  }
  func.func @transform_3(%arg0: i32) -> (i32, i32) {
    %c0_i32 = arith.constant 0 : i32
    %c0_i32_0 = arith.constant 0 : i32
    return %arg0, %c0_i32 : i32, i32
  }
}

module attributes {stable_mosaic.version = 11 : i64} {
  func.func @_linear_kernel(%arg0: i32, %arg1: i32, %arg2: i32, %arg3: memref<16x32xbf16, #tpu.memory_space<vmem>>, %arg4: memref<32x96xbf16, #tpu.memory_space<vmem>>, %arg5: memref<1x96xf32, #tpu.memory_space<vmem>>, %arg6: memref<16x96xbf16, #tpu.memory_space<vmem>>, %arg7: memref<16x96xf32, #tpu.memory_space<vmem>>) attributes {dimension_semantics = [#tpu.dimension_semantics<parallel>, #tpu.dimension_semantics<parallel>, #tpu.dimension_semantics<arbitrary>], iteration_bounds = array<i64: 1, 1, 1>, scalar_prefetch = 0 : i64, scratch_operands = 1 : i64, tpu.core_type = #tpu.core_type<tc>, window_params = [{transform_indices = @transform_0, window_bounds = array<i64: 16, 32>}, {transform_indices = @transform_1, window_bounds = array<i64: 32, 96>}, {transform_indices = @transform_2, window_bounds = array<i64: 1, 96>}, {transform_indices = @transform_3, window_bounds = array<i64: 16, 96>}]} {
    %c0_i32 = arith.constant 0 : i32
    %0 = arith.cmpi eq, %arg2, %c0_i32 : i32
    %1 = arith.extui %0 : i1 to i32
    %c0_i32_0 = arith.constant 0 : i32
    %2 = arith.cmpi ne, %1, %c0_i32_0 : i32
    scf.if %2 {
      %cst_10 = arith.constant 0.000000e+00 : f32
      %12 = vector.broadcast %cst_10 : f32 to vector<16x96xf32>
      %c0_11 = arith.constant 0 : index
      %c0_12 = arith.constant 0 : index
      %13 = vector.load %arg7[%c0_11, %c0_12] : memref<16x96xf32, #tpu.memory_space<vmem>>, vector<16x96xf32>
      tpu.vector_store %arg7[%c0_11, %c0_12], %12 {strides = array<i32>} : memref<16x96xf32, #tpu.memory_space<vmem>>, vector<16x96xf32>,
    } else {
    }
    %c0 = arith.constant 0 : index
    %c0_1 = arith.constant 0 : index
    %3 = vector.load %arg7[%c0, %c0_1] : memref<16x96xf32, #tpu.memory_space<vmem>>, vector<16x96xf32>
    %c0_2 = arith.constant 0 : index
    %c0_3 = arith.constant 0 : index
    %4 = vector.load %arg3[%c0_2, %c0_3] : memref<16x32xbf16, #tpu.memory_space<vmem>>, vector<16x32xbf16>
    %c0_4 = arith.constant 0 : index
    %c0_5 = arith.constant 0 : index
    %5 = vector.load %arg4[%c0_4, %c0_5] : memref<32x96xbf16, #tpu.memory_space<vmem>>, vector<32x96xbf16>
    %cst = arith.constant dense<0.000000e+00> : vector<16x96xf32>
    %6 = tpu.matmul %4, %5, %cst {dimension_numbers = #tpu.dot_dimension_numbers<[1], [0], [0], [1], [0, 0, 1, 1], [], []>} : vector<16x32xbf16>, vector<32x96xbf16>, vector<16x96xf32> -> vector<16x96xf32>
    %7 = arith.addf %3, %6 : vector<16x96xf32>
    %c0_6 = arith.constant 0 : index
    %c0_7 = arith.constant 0 : index
    %8 = vector.load %arg7[%c0_6, %c0_7] : memref<16x96xf32, #tpu.memory_space<vmem>>, vector<16x96xf32>
    tpu.vector_store %arg7[%c0_6, %c0_7], %7 {strides = array<i32>} : memref<16x96xf32, #tpu.memory_space<vmem>>, vector<16x96xf32>,
    %c0_i32_8 = arith.constant 0 : i32
    %9 = arith.cmpi eq, %arg2, %c0_i32_8 : i32
    %10 = arith.extui %9 : i1 to i32
    %c0_i32_9 = arith.constant 0 : i32
    %11 = arith.cmpi ne, %10, %c0_i32_9 : i32
    scf.if %11 {
      %c0_10 = arith.constant 0 : index
      %c0_11 = arith.constant 0 : index
      %12 = vector.load %arg7[%c0_10, %c0_11] : memref<16x96xf32, #tpu.memory_space<vmem>>, vector<16x96xf32>
      %c0_12 = arith.constant 0 : index
      %c0_13 = arith.constant 0 : index
      %13 = vector.load %arg5[%c0_12, %c0_13] : memref<1x96xf32, #tpu.memory_space<vmem>>, vector<1x96xf32>
      %14 = vector.broadcast %13 : vector<1x96xf32> to vector<16x96xf32>
      %15 = arith.addf %12, %14 : vector<16x96xf32>
      %16 = arith.truncf %15 : vector<16x96xf32> to vector<16x96xbf16>
      %c0_14 = arith.constant 0 : index
      %c0_15 = arith.constant 0 : index
      %17 = vector.load %arg6[%c0_14, %c0_15] : memref<16x96xbf16, #tpu.memory_space<vmem>>, vector<16x96xbf16>
      tpu.vector_store %arg6[%c0_14, %c0_15], %16 {strides = array<i32>} : memref<16x96xbf16, #tpu.memory_space<vmem>>, vector<16x96xbf16>,
    } else {
    }
    return
  }
  func.func @transform_0(%arg0: i32, %arg1: i32, %arg2: i32) -> (i32, i32) {
    %c0_i32 = arith.constant 0 : i32
    return %arg0, %arg2 : i32, i32
  }
  func.func @transform_1(%arg0: i32, %arg1: i32, %arg2: i32) -> (i32, i32) {
    %c0_i32 = arith.constant 0 : i32
    return %arg2, %arg1 : i32, i32
  }
  func.func @transform_2(%arg0: i32, %arg1: i32, %arg2: i32) -> (i32, i32) {
    %c0_i32 = arith.constant 0 : i32
    %c0_i32_0 = arith.constant 0 : i32
    return %c0_i32, %arg1 : i32, i32
  }
  func.func @transform_3(%arg0: i32, %arg1: i32, %arg2: i32) -> (i32, i32) {
    %c0_i32 = arith.constant 0 : i32
    return %arg0, %arg1 : i32, i32
  }
}

module attributes {stable_mosaic.version = 11 : i64} {
  func.func @_flash_attn_kernel(%arg0: i32, %arg1: i32, %arg2: i32, %arg3: i32, %arg4: memref<1x1x8x8xbf16, #tpu.memory_space<vmem>>, %arg5: memref<1x1x8x8xbf16, #tpu.memory_space<vmem>>, %arg6: memref<1x1x8x8xbf16, #tpu.memory_space<vmem>>, %arg7: memref<1x1x8x8xbf16, #tpu.memory_space<vmem>>, %arg8: memref<8x1xf32, #tpu.memory_space<vmem>>, %arg9: memref<8x1xf32, #tpu.memory_space<vmem>>, %arg10: memref<8x8xf32, #tpu.memory_space<vmem>>) attributes {dimension_semantics = [#tpu.dimension_semantics<parallel>, #tpu.dimension_semantics<parallel>, #tpu.dimension_semantics<parallel>, #tpu.dimension_semantics<arbitrary>], iteration_bounds = array<i64: 2, 4, 1, 1>, scalar_prefetch = 0 : i64, scratch_operands = 3 : i64, tpu.core_type = #tpu.core_type<tc>, window_params = [{transform_indices = @transform_0, window_bounds = array<i64: 1, 1, 8, 8>}, {transform_indices = @transform_1, window_bounds = array<i64: 1, 1, 8, 8>}, {transform_indices = @transform_2, window_bounds = array<i64: 1, 1, 8, 8>}, {transform_indices = @transform_3, window_bounds = array<i64: 1, 1, 8, 8>}]} {
    %c0_i32 = arith.constant 0 : i32
    %0 = arith.cmpi eq, %arg3, %c0_i32 : i32
    %1 = arith.extui %0 : i1 to i32
    %c0_i32_0 = arith.constant 0 : i32
    %2 = arith.cmpi ne, %1, %c0_i32_0 : i32
    scf.if %2 {
      %cst = arith.constant 0xFF800000 : f32
      %12 = vector.broadcast %cst : f32 to vector<8x1xf32>
      %c0 = arith.constant 0 : index
      %c0_5 = arith.constant 0 : index
      %13 = vector.load %arg8[%c0, %c0_5] : memref<8x1xf32, #tpu.memory_space<vmem>>, vector<8x1xf32>
      tpu.vector_store %arg8[%c0, %c0_5], %12 {strides = array<i32>} : memref<8x1xf32, #tpu.memory_space<vmem>>, vector<8x1xf32>,
      %cst_6 = arith.constant 0.000000e+00 : f32
      %14 = vector.broadcast %cst_6 : f32 to vector<8x1xf32>
      %c0_7 = arith.constant 0 : index
      %c0_8 = arith.constant 0 : index
      %15 = vector.load %arg9[%c0_7, %c0_8] : memref<8x1xf32, #tpu.memory_space<vmem>>, vector<8x1xf32>
      tpu.vector_store %arg9[%c0_7, %c0_8], %14 {strides = array<i32>} : memref<8x1xf32, #tpu.memory_space<vmem>>, vector<8x1xf32>,
      %cst_9 = arith.constant 0.000000e+00 : f32
      %16 = vector.broadcast %cst_9 : f32 to vector<8x8xf32>
      %c0_10 = arith.constant 0 : index
      %c0_11 = arith.constant 0 : index
      %17 = vector.load %arg10[%c0_10, %c0_11] : memref<8x8xf32, #tpu.memory_space<vmem>>, vector<8x8xf32>
      tpu.vector_store %arg10[%c0_10, %c0_11], %16 {strides = array<i32>} : memref<8x8xf32, #tpu.memory_space<vmem>>, vector<8x8xf32>,
    } else {
    }
    %c8_i32 = arith.constant 8 : i32
    %3 = arith.muli %arg3, %c8_i32 : i32
    %c8_i32_1 = arith.constant 8 : i32
    %4 = arith.muli %arg2, %c8_i32_1 : i32
    %c7_i32 = arith.constant 7 : i32
    %5 = arith.addi %4, %c7_i32 : i32
    %6 = arith.cmpi sle, %3, %5 : i32
    %7 = arith.extui %6 : i1 to i32
    %c0_i32_2 = arith.constant 0 : i32
    %8 = arith.cmpi ne, %7, %c0_i32_2 : i32
    scf.if %8 {
      %c0 = arith.constant 0 : index
      %c0_5 = arith.constant 0 : index
      %c0_6 = arith.constant 0 : index
      %c0_7 = arith.constant 0 : index
      %12 = vector.load %arg4[%c0, %c0_5, %c0_6, %c0_7] : memref<1x1x8x8xbf16, #tpu.memory_space<vmem>>, vector<1x1x8x8xbf16>
      %13 = vector.shape_cast %12 : vector<1x1x8x8xbf16> to vector<8x8xbf16>
      %14 = arith.extf %13 : vector<8x8xbf16> to vector<8x8xf32>
      %cst = arith.constant 0.353553385 : f32
      %15 = vector.broadcast %cst : f32 to vector<8x8xf32>
      %16 = arith.mulf %14, %15 : vector<8x8xf32>
      %17 = arith.truncf %16 : vector<8x8xf32> to vector<8x8xbf16>
      %c0_8 = arith.constant 0 : index
      %c0_9 = arith.constant 0 : index
      %c0_10 = arith.constant 0 : index
      %c0_11 = arith.constant 0 : index
      %18 = vector.load %arg5[%c0_8, %c0_9, %c0_10, %c0_11] : memref<1x1x8x8xbf16, #tpu.memory_space<vmem>>, vector<1x1x8x8xbf16>
      %19 = vector.shape_cast %18 : vector<1x1x8x8xbf16> to vector<8x8xbf16>
      %c0_12 = arith.constant 0 : index
      %c0_13 = arith.constant 0 : index
      %c0_14 = arith.constant 0 : index
      %c0_15 = arith.constant 0 : index
      %20 = vector.load %arg6[%c0_12, %c0_13, %c0_14, %c0_15] : memref<1x1x8x8xbf16, #tpu.memory_space<vmem>>, vector<1x1x8x8xbf16>
      %21 = vector.shape_cast %20 : vector<1x1x8x8xbf16> to vector<8x8xbf16>
      %cst_16 = arith.constant dense<0.000000e+00> : vector<8x8xf32>
      %22 = tpu.matmul %17, %19, %cst_16 {dimension_numbers = #tpu.dot_dimension_numbers<[1], [1], [0], [0], [0, 0, 1, 0], [], []>} : vector<8x8xbf16>, vector<8x8xbf16>, vector<8x8xf32> -> vector<8x8xf32>
      %c8_i32_17 = arith.constant 8 : i32
      %23 = arith.muli %arg2, %c8_i32_17 : i32
      %24 = tpu.iota {dimensions = array<i32: 0>} : vector<8x8xi32>
      %25 = vector.broadcast %23 : i32 to vector<8x8xi32>
      %26 = arith.addi %25, %24 : vector<8x8xi32>
      %c8_i32_18 = arith.constant 8 : i32
      %27 = arith.muli %arg3, %c8_i32_18 : i32
      %28 = tpu.iota {dimensions = array<i32: 1>} : vector<8x8xi32>
      %29 = vector.broadcast %27 : i32 to vector<8x8xi32>
      %30 = arith.addi %29, %28 : vector<8x8xi32>
      %31 = arith.cmpi sle, %30, %26 : vector<8x8xi32>
      %cst_19 = arith.constant -1.000000e+30 : f32
      %32 = vector.broadcast %cst_19 : f32 to vector<8x8xf32>
      %33 = arith.select %31, %22, %32 : vector<8x8xi1>, vector<8x8xf32>
      %c0_20 = arith.constant 0 : index
      %c0_21 = arith.constant 0 : index
      %34 = vector.load %arg8[%c0_20, %c0_21] : memref<8x1xf32, #tpu.memory_space<vmem>>, vector<8x1xf32>
      %cst_22 = arith.constant dense<0xFF800000> : vector<8xf32>
      %35 = vector.multi_reduction <maximumf>, %33, %cst_22 [1] : vector<8x8xf32> to vector<8xf32>
      %36 = vector.shape_cast %35 : vector<8xf32> to vector<8x1xf32>
      %37 = arith.maximumf %34, %36 : vector<8x1xf32>
      %38 = arith.subf %34, %37 : vector<8x1xf32>
      %39 = math.exp %38 : vector<8x1xf32>
      %40 = vector.broadcast %37 : vector<8x1xf32> to vector<8x8xf32>
      %41 = arith.subf %33, %40 : vector<8x8xf32>
      %42 = math.exp %41 : vector<8x8xf32>
      %c0_23 = arith.constant 0 : index
      %c0_24 = arith.constant 0 : index
      %43 = vector.load %arg9[%c0_23, %c0_24] : memref<8x1xf32, #tpu.memory_space<vmem>>, vector<8x1xf32>
      %44 = arith.mulf %39, %43 : vector<8x1xf32>
      %cst_25 = arith.constant dense<0.000000e+00> : vector<8xf32>
      %45 = vector.multi_reduction <add>, %42, %cst_25 [1] : vector<8x8xf32> to vector<8xf32>
      %46 = vector.shape_cast %45 : vector<8xf32> to vector<8x1xf32>
      %47 = arith.addf %44, %46 : vector<8x1xf32>
      %c0_26 = arith.constant 0 : index
      %c0_27 = arith.constant 0 : index
      %48 = vector.load %arg9[%c0_26, %c0_27] : memref<8x1xf32, #tpu.memory_space<vmem>>, vector<8x1xf32>
      tpu.vector_store %arg9[%c0_26, %c0_27], %47 {strides = array<i32>} : memref<8x1xf32, #tpu.memory_space<vmem>>, vector<8x1xf32>,
      %c0_28 = arith.constant 0 : index
      %c0_29 = arith.constant 0 : index
      %49 = vector.load %arg10[%c0_28, %c0_29] : memref<8x8xf32, #tpu.memory_space<vmem>>, vector<8x8xf32>
      %50 = vector.broadcast %39 : vector<8x1xf32> to vector<8x8xf32>
      %51 = arith.mulf %50, %49 : vector<8x8xf32>
      %52 = arith.truncf %42 : vector<8x8xf32> to vector<8x8xbf16>
      %cst_30 = arith.constant dense<0.000000e+00> : vector<8x8xf32>
      %53 = tpu.matmul %52, %21, %cst_30 {dimension_numbers = #tpu.dot_dimension_numbers<[1], [0], [0], [1], [0, 0, 1, 1], [], []>} : vector<8x8xbf16>, vector<8x8xbf16>, vector<8x8xf32> -> vector<8x8xf32>
      %54 = arith.addf %51, %53 : vector<8x8xf32>
      %c0_31 = arith.constant 0 : index
      %c0_32 = arith.constant 0 : index
      %55 = vector.load %arg10[%c0_31, %c0_32] : memref<8x8xf32, #tpu.memory_space<vmem>>, vector<8x8xf32>
      tpu.vector_store %arg10[%c0_31, %c0_32], %54 {strides = array<i32>} : memref<8x8xf32, #tpu.memory_space<vmem>>, vector<8x8xf32>,
      %c0_33 = arith.constant 0 : index
      %c0_34 = arith.constant 0 : index
      %56 = vector.load %arg8[%c0_33, %c0_34] : memref<8x1xf32, #tpu.memory_space<vmem>>, vector<8x1xf32>
      tpu.vector_store %arg8[%c0_33, %c0_34], %37 {strides = array<i32>} : memref<8x1xf32, #tpu.memory_space<vmem>>, vector<8x1xf32>,
    } else {
    }
    %c0_i32_3 = arith.constant 0 : i32
    %9 = arith.cmpi eq, %arg3, %c0_i32_3 : i32
    %10 = arith.extui %9 : i1 to i32
    %c0_i32_4 = arith.constant 0 : i32
    %11 = arith.cmpi ne, %10, %c0_i32_4 : i32
    scf.if %11 {
      %c0 = arith.constant 0 : index
      %c0_5 = arith.constant 0 : index
      %12 = vector.load %arg9[%c0, %c0_5] : memref<8x1xf32, #tpu.memory_space<vmem>>, vector<8x1xf32>
      %13 = tpu.reciprocal %12 {approx = true} : vector<8x1xf32> -> vector<8x1xf32>
      %c0_6 = arith.constant 0 : index
      %c0_7 = arith.constant 0 : index
      %14 = vector.load %arg10[%c0_6, %c0_7] : memref<8x8xf32, #tpu.memory_space<vmem>>, vector<8x8xf32>
      %15 = vector.broadcast %13 : vector<8x1xf32> to vector<8x8xf32>
      %16 = arith.mulf %14, %15 : vector<8x8xf32>
      %17 = arith.truncf %16 : vector<8x8xf32> to vector<8x8xbf16>
      %c0_8 = arith.constant 0 : index
      %c0_9 = arith.constant 0 : index
      %c0_10 = arith.constant 0 : index
      %c0_11 = arith.constant 0 : index
      %18 = vector.load %arg7[%c0_8, %c0_9, %c0_10, %c0_11] : memref<1x1x8x8xbf16, #tpu.memory_space<vmem>>, vector<1x1x8x8xbf16>
      %19 = vector.shape_cast %18 : vector<1x1x8x8xbf16> to vector<8x8xbf16>
      %20 = vector.shape_cast %17 : vector<8x8xbf16> to vector<1x1x8x8xbf16>
      tpu.vector_store %arg7[%c0_8, %c0_9, %c0_10, %c0_11], %20 {strides = array<i32>} : memref<1x1x8x8xbf16, #tpu.memory_space<vmem>>, vector<1x1x8x8xbf16>,
    } else {
    }
    return
  }
  func.func @transform_0(%arg0: i32, %arg1: i32, %arg2: i32, %arg3: i32) -> (i32, i32, i32, i32) {
    %c0_i32 = arith.constant 0 : i32
    %c0_i32_0 = arith.constant 0 : i32
    return %arg0, %arg1, %arg2, %c0_i32 : i32, i32, i32, i32
  }
  func.func @transform_1(%arg0: i32, %arg1: i32, %arg2: i32, %arg3: i32) -> (i32, i32, i32, i32) {
    %c0_i32 = arith.constant 0 : i32
    %c0_i32_0 = arith.constant 0 : i32
    return %arg0, %arg1, %arg3, %c0_i32 : i32, i32, i32, i32
  }
  func.func @transform_2(%arg0: i32, %arg1: i32, %arg2: i32, %arg3: i32) -> (i32, i32, i32, i32) {
    %c0_i32 = arith.constant 0 : i32
    %c0_i32_0 = arith.constant 0 : i32
    return %arg0, %arg1, %arg3, %c0_i32 : i32, i32, i32, i32
  }
  func.func @transform_3(%arg0: i32, %arg1: i32, %arg2: i32, %arg3: i32) -> (i32, i32, i32, i32) {
    %c0_i32 = arith.constant 0 : i32
    %c0_i32_0 = arith.constant 0 : i32
    return %arg0, %arg1, %arg2, %c0_i32 : i32, i32, i32, i32
  }
}

module attributes {stable_mosaic.version = 11 : i64} {
  func.func @_linear_kernel(%arg0: i32, %arg1: i32, %arg2: i32, %arg3: memref<16x32xbf16, #tpu.memory_space<vmem>>, %arg4: memref<32x32xbf16, #tpu.memory_space<vmem>>, %arg5: memref<1x32xf32, #tpu.memory_space<vmem>>, %arg6: memref<16x32xf32, #tpu.memory_space<vmem>>, %arg7: memref<16x32xf32, #tpu.memory_space<vmem>>, %arg8: memref<16x32xf32, #tpu.memory_space<vmem>>) attributes {dimension_semantics = [#tpu.dimension_semantics<parallel>, #tpu.dimension_semantics<parallel>, #tpu.dimension_semantics<arbitrary>], iteration_bounds = array<i64: 1, 1, 1>, scalar_prefetch = 0 : i64, scratch_operands = 1 : i64, tpu.core_type = #tpu.core_type<tc>, window_params = [{transform_indices = @transform_0, window_bounds = array<i64: 16, 32>}, {transform_indices = @transform_1, window_bounds = array<i64: 32, 32>}, {transform_indices = @transform_2, window_bounds = array<i64: 1, 32>}, {transform_indices = @transform_3, window_bounds = array<i64: 16, 32>}, {transform_indices = @transform_4, window_bounds = array<i64: 16, 32>}]} {
    %c0_i32 = arith.constant 0 : i32
    %0 = arith.cmpi eq, %arg2, %c0_i32 : i32
    %1 = arith.extui %0 : i1 to i32
    %c0_i32_0 = arith.constant 0 : i32
    %2 = arith.cmpi ne, %1, %c0_i32_0 : i32
    scf.if %2 {
      %cst_10 = arith.constant 0.000000e+00 : f32
      %12 = vector.broadcast %cst_10 : f32 to vector<16x32xf32>
      %c0_11 = arith.constant 0 : index
      %c0_12 = arith.constant 0 : index
      %13 = vector.load %arg8[%c0_11, %c0_12] : memref<16x32xf32, #tpu.memory_space<vmem>>, vector<16x32xf32>
      tpu.vector_store %arg8[%c0_11, %c0_12], %12 {strides = array<i32>} : memref<16x32xf32, #tpu.memory_space<vmem>>, vector<16x32xf32>,
    } else {
    }
    %c0 = arith.constant 0 : index
    %c0_1 = arith.constant 0 : index
    %3 = vector.load %arg8[%c0, %c0_1] : memref<16x32xf32, #tpu.memory_space<vmem>>, vector<16x32xf32>
    %c0_2 = arith.constant 0 : index
    %c0_3 = arith.constant 0 : index
    %4 = vector.load %arg3[%c0_2, %c0_3] : memref<16x32xbf16, #tpu.memory_space<vmem>>, vector<16x32xbf16>
    %c0_4 = arith.constant 0 : index
    %c0_5 = arith.constant 0 : index
    %5 = vector.load %arg4[%c0_4, %c0_5] : memref<32x32xbf16, #tpu.memory_space<vmem>>, vector<32x32xbf16>
    %cst = arith.constant dense<0.000000e+00> : vector<16x32xf32>
    %6 = tpu.matmul %4, %5, %cst {dimension_numbers = #tpu.dot_dimension_numbers<[1], [0], [0], [1], [0, 0, 1, 1], [], []>} : vector<16x32xbf16>, vector<32x32xbf16>, vector<16x32xf32> -> vector<16x32xf32>
    %7 = arith.addf %3, %6 : vector<16x32xf32>
    %c0_6 = arith.constant 0 : index
    %c0_7 = arith.constant 0 : index
    %8 = vector.load %arg8[%c0_6, %c0_7] : memref<16x32xf32, #tpu.memory_space<vmem>>, vector<16x32xf32>
    tpu.vector_store %arg8[%c0_6, %c0_7], %7 {strides = array<i32>} : memref<16x32xf32, #tpu.memory_space<vmem>>, vector<16x32xf32>,
    %c0_i32_8 = arith.constant 0 : i32
    %9 = arith.cmpi eq, %arg2, %c0_i32_8 : i32
    %10 = arith.extui %9 : i1 to i32
    %c0_i32_9 = arith.constant 0 : i32
    %11 = arith.cmpi ne, %10, %c0_i32_9 : i32
    scf.if %11 {
      %c0_10 = arith.constant 0 : index
      %c0_11 = arith.constant 0 : index
      %12 = vector.load %arg8[%c0_10, %c0_11] : memref<16x32xf32, #tpu.memory_space<vmem>>, vector<16x32xf32>
      %c0_12 = arith.constant 0 : index
      %c0_13 = arith.constant 0 : index
      %13 = vector.load %arg5[%c0_12, %c0_13] : memref<1x32xf32, #tpu.memory_space<vmem>>, vector<1x32xf32>
      %14 = vector.broadcast %13 : vector<1x32xf32> to vector<16x32xf32>
      %15 = arith.addf %12, %14 : vector<16x32xf32>
      %c0_14 = arith.constant 0 : index
      %c0_15 = arith.constant 0 : index
      %16 = vector.load %arg6[%c0_14, %c0_15] : memref<16x32xf32, #tpu.memory_space<vmem>>, vector<16x32xf32>
      %17 = arith.addf %15, %16 : vector<16x32xf32>
      %c0_16 = arith.constant 0 : index
      %c0_17 = arith.constant 0 : index
      %18 = vector.load %arg7[%c0_16, %c0_17] : memref<16x32xf32, #tpu.memory_space<vmem>>, vector<16x32xf32>
      tpu.vector_store %arg7[%c0_16, %c0_17], %17 {strides = array<i32>} : memref<16x32xf32, #tpu.memory_space<vmem>>, vector<16x32xf32>,
    } else {
    }
    return
  }
  func.func @transform_0(%arg0: i32, %arg1: i32, %arg2: i32) -> (i32, i32) {
    %c0_i32 = arith.constant 0 : i32
    return %arg0, %arg2 : i32, i32
  }
  func.func @transform_1(%arg0: i32, %arg1: i32, %arg2: i32) -> (i32, i32) {
    %c0_i32 = arith.constant 0 : i32
    return %arg2, %arg1 : i32, i32
  }
  func.func @transform_2(%arg0: i32, %arg1: i32, %arg2: i32) -> (i32, i32) {
    %c0_i32 = arith.constant 0 : i32
    %c0_i32_0 = arith.constant 0 : i32
    return %c0_i32, %arg1 : i32, i32
  }
  func.func @transform_3(%arg0: i32, %arg1: i32, %arg2: i32) -> (i32, i32) {
    %c0_i32 = arith.constant 0 : i32
    return %arg0, %arg1 : i32, i32
  }
  func.func @transform_4(%arg0: i32, %arg1: i32, %arg2: i32) -> (i32, i32) {
    %c0_i32 = arith.constant 0 : i32
    return %arg0, %arg1 : i32, i32
  }
}

module attributes {stable_mosaic.version = 11 : i64} {
  func.func @_linear_kernel(%arg0: i32, %arg1: i32, %arg2: i32, %arg3: memref<16x32xbf16, #tpu.memory_space<vmem>>, %arg4: memref<32x128xbf16, #tpu.memory_space<vmem>>, %arg5: memref<1x128xf32, #tpu.memory_space<vmem>>, %arg6: memref<16x128xbf16, #tpu.memory_space<vmem>>, %arg7: memref<16x128xf32, #tpu.memory_space<vmem>>) attributes {dimension_semantics = [#tpu.dimension_semantics<parallel>, #tpu.dimension_semantics<parallel>, #tpu.dimension_semantics<arbitrary>], iteration_bounds = array<i64: 1, 1, 1>, scalar_prefetch = 0 : i64, scratch_operands = 1 : i64, tpu.core_type = #tpu.core_type<tc>, window_params = [{transform_indices = @transform_0, window_bounds = array<i64: 16, 32>}, {transform_indices = @transform_1, window_bounds = array<i64: 32, 128>}, {transform_indices = @transform_2, window_bounds = array<i64: 1, 128>}, {transform_indices = @transform_3, window_bounds = array<i64: 16, 128>}]} {
    %c0_i32 = arith.constant 0 : i32
    %0 = arith.cmpi eq, %arg2, %c0_i32 : i32
    %1 = arith.extui %0 : i1 to i32
    %c0_i32_0 = arith.constant 0 : i32
    %2 = arith.cmpi ne, %1, %c0_i32_0 : i32
    scf.if %2 {
      %cst_10 = arith.constant 0.000000e+00 : f32
      %12 = vector.broadcast %cst_10 : f32 to vector<16x128xf32>
      %c0_11 = arith.constant 0 : index
      %c0_12 = arith.constant 0 : index
      %13 = vector.load %arg7[%c0_11, %c0_12] : memref<16x128xf32, #tpu.memory_space<vmem>>, vector<16x128xf32>
      tpu.vector_store %arg7[%c0_11, %c0_12], %12 {strides = array<i32>} : memref<16x128xf32, #tpu.memory_space<vmem>>, vector<16x128xf32>,
    } else {
    }
    %c0 = arith.constant 0 : index
    %c0_1 = arith.constant 0 : index
    %3 = vector.load %arg7[%c0, %c0_1] : memref<16x128xf32, #tpu.memory_space<vmem>>, vector<16x128xf32>
    %c0_2 = arith.constant 0 : index
    %c0_3 = arith.constant 0 : index
    %4 = vector.load %arg3[%c0_2, %c0_3] : memref<16x32xbf16, #tpu.memory_space<vmem>>, vector<16x32xbf16>
    %c0_4 = arith.constant 0 : index
    %c0_5 = arith.constant 0 : index
    %5 = vector.load %arg4[%c0_4, %c0_5] : memref<32x128xbf16, #tpu.memory_space<vmem>>, vector<32x128xbf16>
    %cst = arith.constant dense<0.000000e+00> : vector<16x128xf32>
    %6 = tpu.matmul %4, %5, %cst {dimension_numbers = #tpu.dot_dimension_numbers<[1], [0], [0], [1], [0, 0, 1, 1], [], []>} : vector<16x32xbf16>, vector<32x128xbf16>, vector<16x128xf32> -> vector<16x128xf32>
    %7 = arith.addf %3, %6 : vector<16x128xf32>
    %c0_6 = arith.constant 0 : index
    %c0_7 = arith.constant 0 : index
    %8 = vector.load %arg7[%c0_6, %c0_7] : memref<16x128xf32, #tpu.memory_space<vmem>>, vector<16x128xf32>
    tpu.vector_store %arg7[%c0_6, %c0_7], %7 {strides = array<i32>} : memref<16x128xf32, #tpu.memory_space<vmem>>, vector<16x128xf32>,
    %c0_i32_8 = arith.constant 0 : i32
    %9 = arith.cmpi eq, %arg2, %c0_i32_8 : i32
    %10 = arith.extui %9 : i1 to i32
    %c0_i32_9 = arith.constant 0 : i32
    %11 = arith.cmpi ne, %10, %c0_i32_9 : i32
    scf.if %11 {
      %c0_10 = arith.constant 0 : index
      %c0_11 = arith.constant 0 : index
      %12 = vector.load %arg7[%c0_10, %c0_11] : memref<16x128xf32, #tpu.memory_space<vmem>>, vector<16x128xf32>
      %c0_12 = arith.constant 0 : index
      %c0_13 = arith.constant 0 : index
      %13 = vector.load %arg5[%c0_12, %c0_13] : memref<1x128xf32, #tpu.memory_space<vmem>>, vector<1x128xf32>
      %14 = vector.broadcast %13 : vector<1x128xf32> to vector<16x128xf32>
      %15 = arith.addf %12, %14 : vector<16x128xf32>
      %cst_14 = arith.constant 5.000000e-01 : f32
      %16 = vector.broadcast %cst_14 : f32 to vector<16x128xf32>
      %17 = arith.mulf %16, %15 : vector<16x128xf32>
      %cst_15 = arith.constant 0.707106769 : f32
      %18 = vector.broadcast %cst_15 : f32 to vector<16x128xf32>
      %19 = arith.mulf %15, %18 : vector<16x128xf32>
      %20 = math.erf %19 : vector<16x128xf32>
      %cst_16 = arith.constant 1.000000e+00 : f32
      %21 = vector.broadcast %cst_16 : f32 to vector<16x128xf32>
      %22 = arith.addf %21, %20 : vector<16x128xf32>
      %23 = arith.mulf %17, %22 : vector<16x128xf32>
      %24 = arith.truncf %23 : vector<16x128xf32> to vector<16x128xbf16>
      %c0_17 = arith.constant 0 : index
      %c0_18 = arith.constant 0 : index
      %25 = vector.load %arg6[%c0_17, %c0_18] : memref<16x128xbf16, #tpu.memory_space<vmem>>, vector<16x128xbf16>
      tpu.vector_store %arg6[%c0_17, %c0_18], %24 {strides = array<i32>} : memref<16x128xbf16, #tpu.memory_space<vmem>>, vector<16x128xbf16>,
    } else {
    }
    return
  }
  func.func @transform_0(%arg0: i32, %arg1: i32, %arg2: i32) -> (i32, i32) {
    %c0_i32 = arith.constant 0 : i32
    return %arg0, %arg2 : i32, i32
  }
  func.func @transform_1(%arg0: i32, %arg1: i32, %arg2: i32) -> (i32, i32) {
    %c0_i32 = arith.constant 0 : i32
    return %arg2, %arg1 : i32, i32
  }
  func.func @transform_2(%arg0: i32, %arg1: i32, %arg2: i32) -> (i32, i32) {
    %c0_i32 = arith.constant 0 : i32
    %c0_i32_0 = arith.constant 0 : i32
    return %c0_i32, %arg1 : i32, i32
  }
  func.func @transform_3(%arg0: i32, %arg1: i32, %arg2: i32) -> (i32, i32) {
    %c0_i32 = arith.constant 0 : i32
    return %arg0, %arg1 : i32, i32
  }
}

module attributes {stable_mosaic.version = 11 : i64} {
  func.func @_linear_kernel(%arg0: i32, %arg1: i32, %arg2: i32, %arg3: memref<16x128xbf16, #tpu.memory_space<vmem>>, %arg4: memref<128x32xbf16, #tpu.memory_space<vmem>>, %arg5: memref<1x32xf32, #tpu.memory_space<vmem>>, %arg6: memref<16x32xf32, #tpu.memory_space<vmem>>, %arg7: memref<16x32xf32, #tpu.memory_space<vmem>>, %arg8: memref<16x32xf32, #tpu.memory_space<vmem>>) attributes {dimension_semantics = [#tpu.dimension_semantics<parallel>, #tpu.dimension_semantics<parallel>, #tpu.dimension_semantics<arbitrary>], iteration_bounds = array<i64: 1, 1, 1>, scalar_prefetch = 0 : i64, scratch_operands = 1 : i64, tpu.core_type = #tpu.core_type<tc>, window_params = [{transform_indices = @transform_0, window_bounds = array<i64: 16, 128>}, {transform_indices = @transform_1, window_bounds = array<i64: 128, 32>}, {transform_indices = @transform_2, window_bounds = array<i64: 1, 32>}, {transform_indices = @transform_3, window_bounds = array<i64: 16, 32>}, {transform_indices = @transform_4, window_bounds = array<i64: 16, 32>}]} {
    %c0_i32 = arith.constant 0 : i32
    %0 = arith.cmpi eq, %arg2, %c0_i32 : i32
    %1 = arith.extui %0 : i1 to i32
    %c0_i32_0 = arith.constant 0 : i32
    %2 = arith.cmpi ne, %1, %c0_i32_0 : i32
    scf.if %2 {
      %cst_10 = arith.constant 0.000000e+00 : f32
      %12 = vector.broadcast %cst_10 : f32 to vector<16x32xf32>
      %c0_11 = arith.constant 0 : index
      %c0_12 = arith.constant 0 : index
      %13 = vector.load %arg8[%c0_11, %c0_12] : memref<16x32xf32, #tpu.memory_space<vmem>>, vector<16x32xf32>
      tpu.vector_store %arg8[%c0_11, %c0_12], %12 {strides = array<i32>} : memref<16x32xf32, #tpu.memory_space<vmem>>, vector<16x32xf32>,
    } else {
    }
    %c0 = arith.constant 0 : index
    %c0_1 = arith.constant 0 : index
    %3 = vector.load %arg8[%c0, %c0_1] : memref<16x32xf32, #tpu.memory_space<vmem>>, vector<16x32xf32>
    %c0_2 = arith.constant 0 : index
    %c0_3 = arith.constant 0 : index
    %4 = vector.load %arg3[%c0_2, %c0_3] : memref<16x128xbf16, #tpu.memory_space<vmem>>, vector<16x128xbf16>
    %c0_4 = arith.constant 0 : index
    %c0_5 = arith.constant 0 : index
    %5 = vector.load %arg4[%c0_4, %c0_5] : memref<128x32xbf16, #tpu.memory_space<vmem>>, vector<128x32xbf16>
    %cst = arith.constant dense<0.000000e+00> : vector<16x32xf32>
    %6 = tpu.matmul %4, %5, %cst {dimension_numbers = #tpu.dot_dimension_numbers<[1], [0], [0], [1], [0, 0, 1, 1], [], []>} : vector<16x128xbf16>, vector<128x32xbf16>, vector<16x32xf32> -> vector<16x32xf32>
    %7 = arith.addf %3, %6 : vector<16x32xf32>
    %c0_6 = arith.constant 0 : index
    %c0_7 = arith.constant 0 : index
    %8 = vector.load %arg8[%c0_6, %c0_7] : memref<16x32xf32, #tpu.memory_space<vmem>>, vector<16x32xf32>
    tpu.vector_store %arg8[%c0_6, %c0_7], %7 {strides = array<i32>} : memref<16x32xf32, #tpu.memory_space<vmem>>, vector<16x32xf32>,
    %c0_i32_8 = arith.constant 0 : i32
    %9 = arith.cmpi eq, %arg2, %c0_i32_8 : i32
    %10 = arith.extui %9 : i1 to i32
    %c0_i32_9 = arith.constant 0 : i32
    %11 = arith.cmpi ne, %10, %c0_i32_9 : i32
    scf.if %11 {
      %c0_10 = arith.constant 0 : index
      %c0_11 = arith.constant 0 : index
      %12 = vector.load %arg8[%c0_10, %c0_11] : memref<16x32xf32, #tpu.memory_space<vmem>>, vector<16x32xf32>
      %c0_12 = arith.constant 0 : index
      %c0_13 = arith.constant 0 : index
      %13 = vector.load %arg5[%c0_12, %c0_13] : memref<1x32xf32, #tpu.memory_space<vmem>>, vector<1x32xf32>
      %14 = vector.broadcast %13 : vector<1x32xf32> to vector<16x32xf32>
      %15 = arith.addf %12, %14 : vector<16x32xf32>
      %c0_14 = arith.constant 0 : index
      %c0_15 = arith.constant 0 : index
      %16 = vector.load %arg6[%c0_14, %c0_15] : memref<16x32xf32, #tpu.memory_space<vmem>>, vector<16x32xf32>
      %17 = arith.addf %15, %16 : vector<16x32xf32>
      %c0_16 = arith.constant 0 : index
      %c0_17 = arith.constant 0 : index
      %18 = vector.load %arg7[%c0_16, %c0_17] : memref<16x32xf32, #tpu.memory_space<vmem>>, vector<16x32xf32>
      tpu.vector_store %arg7[%c0_16, %c0_17], %17 {strides = array<i32>} : memref<16x32xf32, #tpu.memory_space<vmem>>, vector<16x32xf32>,
    } else {
    }
    return
  }
  func.func @transform_0(%arg0: i32, %arg1: i32, %arg2: i32) -> (i32, i32) {
    %c0_i32 = arith.constant 0 : i32
    return %arg0, %arg2 : i32, i32
  }
  func.func @transform_1(%arg0: i32, %arg1: i32, %arg2: i32) -> (i32, i32) {
    %c0_i32 = arith.constant 0 : i32
    return %arg2, %arg1 : i32, i32
  }
  func.func @transform_2(%arg0: i32, %arg1: i32, %arg2: i32) -> (i32, i32) {
    %c0_i32 = arith.constant 0 : i32
    %c0_i32_0 = arith.constant 0 : i32
    return %c0_i32, %arg1 : i32, i32
  }
  func.func @transform_3(%arg0: i32, %arg1: i32, %arg2: i32) -> (i32, i32) {
    %c0_i32 = arith.constant 0 : i32
    return %arg0, %arg1 : i32, i32
  }
  func.func @transform_4(%arg0: i32, %arg1: i32, %arg2: i32) -> (i32, i32) {
    %c0_i32 = arith.constant 0 : i32
    return %arg0, %arg1 : i32, i32
  }
}

module attributes {stable_mosaic.version = 11 : i64} {
  func.func @_layernorm_kernel(%arg0: i32, %arg1: memref<2x32xf32, #tpu.memory_space<vmem>>, %arg2: memref<1x32xf32, #tpu.memory_space<vmem>>, %arg3: memref<1x32xf32, #tpu.memory_space<vmem>>, %arg4: memref<2x32xbf16, #tpu.memory_space<vmem>>) attributes {dimension_semantics = [#tpu.dimension_semantics<parallel>], iteration_bounds = array<i64: 1>, scalar_prefetch = 0 : i64, scratch_operands = 0 : i64, tpu.core_type = #tpu.core_type<tc>, window_params = [{transform_indices = @transform_0, window_bounds = array<i64: 2, 32>}, {pipeline_mode = #tpu.pipeline_mode<synchronous>, transform_indices = @transform_1, window_bounds = array<i64: 1, 32>}, {pipeline_mode = #tpu.pipeline_mode<synchronous>, transform_indices = @transform_2, window_bounds = array<i64: 1, 32>}, {transform_indices = @transform_3, window_bounds = array<i64: 2, 32>}]} {
    %c0 = arith.constant 0 : index
    %c0_0 = arith.constant 0 : index
    %0 = vector.load %arg1[%c0, %c0_0] : memref<2x32xf32, #tpu.memory_space<vmem>>, vector<2x32xf32>
    %cst = arith.constant dense<0.000000e+00> : vector<2xf32>
    %1 = vector.multi_reduction <add>, %0, %cst [1] : vector<2x32xf32> to vector<2xf32>
    %2 = vector.shape_cast %1 : vector<2xf32> to vector<2x1xf32>
    %cst_1 = arith.constant 3.200000e+01 : f32
    %3 = vector.broadcast %cst_1 : f32 to vector<2x1xf32>
    %4 = arith.divf %2, %3 : vector<2x1xf32>
    %5 = vector.broadcast %4 : vector<2x1xf32> to vector<2x32xf32>
    %6 = arith.subf %0, %5 : vector<2x32xf32>
    %7 = arith.mulf %6, %6 : vector<2x32xf32>
    %cst_2 = arith.constant dense<0.000000e+00> : vector<2xf32>
    %8 = vector.multi_reduction <add>, %7, %cst_2 [1] : vector<2x32xf32> to vector<2xf32>
    %9 = vector.shape_cast %8 : vector<2xf32> to vector<2x1xf32>
    %cst_3 = arith.constant 3.200000e+01 : f32
    %10 = vector.broadcast %cst_3 : f32 to vector<2x1xf32>
    %11 = arith.divf %9, %10 : vector<2x1xf32>
    %12 = vector.broadcast %4 : vector<2x1xf32> to vector<2x32xf32>
    %13 = arith.subf %0, %12 : vector<2x32xf32>
    %cst_4 = arith.constant 9.99999974E-6 : f32
    %14 = vector.broadcast %cst_4 : f32 to vector<2x1xf32>
    %15 = arith.addf %11, %14 : vector<2x1xf32>
    %16 = math.rsqrt %15 : vector<2x1xf32>
    %17 = vector.broadcast %16 : vector<2x1xf32> to vector<2x32xf32>
    %18 = arith.mulf %13, %17 : vector<2x32xf32>
    %c0_5 = arith.constant 0 : index
    %c0_6 = arith.constant 0 : index
    %19 = vector.load %arg2[%c0_5, %c0_6] : memref<1x32xf32, #tpu.memory_space<vmem>>, vector<1x32xf32>
    %20 = vector.broadcast %19 : vector<1x32xf32> to vector<2x32xf32>
    %21 = arith.mulf %18, %20 : vector<2x32xf32>
    %c0_7 = arith.constant 0 : index
    %c0_8 = arith.constant 0 : index
    %22 = vector.load %arg3[%c0_7, %c0_8] : memref<1x32xf32, #tpu.memory_space<vmem>>, vector<1x32xf32>
    %23 = vector.broadcast %22 : vector<1x32xf32> to vector<2x32xf32>
    %24 = arith.addf %21, %23 : vector<2x32xf32>
    %25 = arith.truncf %24 : vector<2x32xf32> to vector<2x32xbf16>
    %c0_9 = arith.constant 0 : index
    %c0_10 = arith.constant 0 : index
    %26 = vector.load %arg4[%c0_9, %c0_10] : memref<2x32xbf16, #tpu.memory_space<vmem>>, vector<2x32xbf16>
    tpu.vector_store %arg4[%c0_9, %c0_10], %25 {strides = array<i32>} : memref<2x32xbf16, #tpu.memory_space<vmem>>, vector<2x32xbf16>,
    return
  }
  func.func @transform_0(%arg0: i32) -> (i32, i32) {
    %c0_i32 = arith.constant 0 : i32
    %c0_i32_0 = arith.constant 0 : i32
    return %arg0, %c0_i32 : i32, i32
  }
  func.func @transform_1(%arg0: i32) -> (i32, i32) {
    %c0_i32 = arith.constant 0 : i32
    %c0_i32_0 = arith.constant 0 : i32
    %c0_i32_1 = arith.constant 0 : i32
    return %c0_i32, %c0_i32_0 : i32, i32
  }
  func.func @transform_2(%arg0: i32) -> (i32, i32) {
    %c0_i32 = arith.constant 0 : i32
    %c0_i32_0 = arith.constant 0 : i32
    %c0_i32_1 = arith.constant 0 : i32
    return %c0_i32, %c0_i32_0 : i32, i32
  }
  func.func @transform_3(%arg0: i32) -> (i32, i32) {
    %c0_i32 = arith.constant 0 : i32
    %c0_i32_0 = arith.constant 0 : i32
    return %arg0, %c0_i32 : i32, i32
  }
}

module attributes {stable_mosaic.version = 11 : i64} {
  func.func @_lm_head_kernel(%arg0: i32, %arg1: memref<2x32xbf16, #tpu.memory_space<vmem>>, %arg2: memref<256x32xbf16, #tpu.memory_space<vmem>>, %arg3: memref<2x256xf32, #tpu.memory_space<vmem>>) attributes {dimension_semantics = [#tpu.dimension_semantics<parallel>], iteration_bounds = array<i64: 1>, scalar_prefetch = 0 : i64, scratch_operands = 0 : i64, tpu.core_type = #tpu.core_type<tc>, window_params = [{pipeline_mode = #tpu.pipeline_mode<synchronous>, transform_indices = @transform_0, window_bounds = array<i64: 2, 32>}, {transform_indices = @transform_1, window_bounds = array<i64: 256, 32>}, {transform_indices = @transform_2, window_bounds = array<i64: 2, 256>}]} {
    %c0 = arith.constant 0 : index
    %c0_0 = arith.constant 0 : index
    %0 = vector.load %arg1[%c0, %c0_0] : memref<2x32xbf16, #tpu.memory_space<vmem>>, vector<2x32xbf16>
    %c0_1 = arith.constant 0 : index
    %c0_2 = arith.constant 0 : index
    %1 = vector.load %arg2[%c0_1, %c0_2] : memref<256x32xbf16, #tpu.memory_space<vmem>>, vector<256x32xbf16>
    %cst = arith.constant dense<0.000000e+00> : vector<2x256xf32>
    %2 = tpu.matmul %0, %1, %cst {dimension_numbers = #tpu.dot_dimension_numbers<[1], [1], [0], [0], [0, 0, 1, 0], [], []>} : vector<2x32xbf16>, vector<256x32xbf16>, vector<2x256xf32> -> vector<2x256xf32>
    %c0_3 = arith.constant 0 : index
    %c0_4 = arith.constant 0 : index
    %3 = vector.load %arg3[%c0_3, %c0_4] : memref<2x256xf32, #tpu.memory_space<vmem>>, vector<2x256xf32>
    tpu.vector_store %arg3[%c0_3, %c0_4], %2 {strides = array<i32>} : memref<2x256xf32, #tpu.memory_space<vmem>>, vector<2x256xf32>,
    return
  }
  func.func @transform_0(%arg0: i32) -> (i32, i32) {
    %c0_i32 = arith.constant 0 : i32
    %c0_i32_0 = arith.constant 0 : i32
    %c0_i32_1 = arith.constant 0 : i32
    return %c0_i32, %c0_i32_0 : i32, i32
  }
  func.func @transform_1(%arg0: i32) -> (i32, i32) {
    %c0_i32 = arith.constant 0 : i32
    %c0_i32_0 = arith.constant 0 : i32
    return %arg0, %c0_i32 : i32, i32
  }
  func.func @transform_2(%arg0: i32) -> (i32, i32) {
    %c0_i32 = arith.constant 0 : i32
    %c0_i32_0 = arith.constant 0 : i32
    return %c0_i32, %arg0 : i32, i32
  }
}

</mosaic_0001>

<llo_original>
// kernel: gpt_forward.17
$region0: #{gpt_forward.17}
  #allocation0 [shape = 'u32[]', space=smem, size = 0x4, offset = 0x4, fixed_abs, tag = 'smem constant byte address 0x4 - core index']
  #allocation1 [shape = 'u32[72,128]{1,0:T(1,128)}', space=vmem, size = 0x9000, scoped, tag = 'internal scratch']
  #allocation2 [shape = 'f32[16,96]{1,0:T(8,128)}', space=vmem, size = 0x2000, scoped, tag = 'scratch operand']
  %s0 = inlined_call_operand.vmem [shape: bf16[16,32], index: 0, kind: input, shape index: {}]
  %s1 = inlined_call_operand.vmem [shape: bf16[32,96], index: 1, kind: input, shape index: {}]
  %s2 = inlined_call_operand.vmem [shape: f32[1,96], index: 2, kind: input, shape index: {}]
  %s3 = inlined_call_operand.vmem [shape: bf16[16,96], index: 3, kind: output, shape index: {}]
  %s4 = sld [smem:[#allocation0]]
  $region30: #{gpt_forward.17} parent=0
    _
  %s6 = ssub.s32 1, %s4
  %s7 = scalar_select 0, %s6, %s4
  // Predicated region
  $region2: #{gpt_forward.17} parent=0 // pred_check
    _
  $region3: #{gpt_forward.17} parent=0 // pred_check_branch
    %9 = sbr.rel (0) target = $region5
  $region4: #{gpt_forward.17} parent=0 // pred_region
    _
  $region5: #{gpt_forward.17} parent=0 // pred_fallthru
    _
  // Predicated region
  $region6: #{gpt_forward.17} parent=0 // pred_check
    _
  $region7: #{gpt_forward.17} parent=0 // pred_check_branch
    %11 = sbr.rel (0) target = $region9
  $region8: #{gpt_forward.17} parent=0 // pred_region
    _
  $region9: #{gpt_forward.17} parent=0 // pred_fallthru
    _
  // Predicated region
  $region10: #{gpt_forward.17} parent=0 // pred_check
    _
  $region11: #{gpt_forward.17} parent=0 // pred_check_branch
    %13 = sbr.rel (0) target = $region13
  $region12: #{gpt_forward.17} parent=0 // pred_region
    _
  $region13: #{gpt_forward.17} parent=0 // pred_fallthru
    _
  %p15 = scmp.eq.s32.totalorder 0, 0
  // Predicated region
  $region14: #{gpt_forward.17} parent=0 // pred_check
    %p16 = pneg %p15
  $region15: #{gpt_forward.17} parent=0 // pred_check_branch
    %18 = sbr.rel (%p16) target = $region17
  $region16: #{gpt_forward.17} parent=0 // pred_region
    %vm19 = vcmask 785408
    %20 = vst.msk [vmem:[#allocation2] sm:$0xff] %vm19, 0.0
    %21 = vst.msk [vmem:[#allocation2 + $0x8] sm:$0xff] %vm19, 0.0
  $region17: #{gpt_forward.17} parent=0 // pred_fallthru
    _
  %v22 = vld [vmem:[#allocation2] sm:$0xff]
  %v23 = vld [vmem:[#allocation2 + $0x8] sm:$0xff]
  %v24 = vld [vmem:[%s0] sm:$0xf]
  %v25 = vld [vmem:[%s0 + $0x4] sm:$0xf]
  %v26 = vld [vmem:[%s1] sm:$0xf]
  %v27 = vld [vmem:[%s1 + $0x4] sm:$0xf]
  %v28 = vld [vmem:[%s1 + $0x8] sm:$0xf]
  %v29 = vld [vmem:[%s1 + $0xc] sm:$0xf]
  %v32 = vunpack.c.l.b16 %v24
  %v33 = vunpack.c.l.b16 %v25
  %v34 = vpack.c.b16 %v33, %v32
  %v39 = vunpack.c.l.b16 %v26
  %v40 = vunpack.c.l.b16 %v27
  %v41 = vunpack.c.l.b16 %v28
  %v42 = vunpack.c.l.b16 %v29
  %v43 = vpack.c.b16 %v40, %v39
  %v44 = vpack.c.b16 %v42, %v41
  %vm47 = vcmask 261120
  %v49 = vsel %vm47, %v34, 0
  %51 = vmatpush.bf16.msra.mxu0 0
  %52 = vmatpush.bf16.msra.mxu0 0
  %53 = vmatpush.bf16.msra.mxu0 0
  %54 = vmatpush.bf16.msra.mxu0 0
  %55 = vmatpush.bf16.msra.mxu0 0
  %56 = vmatpush.bf16.msra.mxu0 0
  %57 = vmatpush.bf16.msra.mxu0 %v44
  %58 = vmatpush.bf16.msra.mxu0 %v43
  %59 = vmatmul.bf16.gmra.mxu0 %v49
  %v60 = vpop.f32.mrf.mxu0
  %v61 = vadd.f32 0.0, %v60
  %v62 = vpop.f32.mrf.mxu0
  %v63 = vadd.f32 0.0, %v62
  %64 = vdwg.mxu0
  %v65 = vadd.f32 %v22, %v61
  %v66 = vadd.f32 %v23, %v63
  %vm67 = vcmask 785408
  %68 = vst.msk [vmem:[#allocation2] sm:$0xff] %vm67, %v65
  %69 = vst.msk [vmem:[#allocation2 + $0x8] sm:$0xff] %vm67, %v66
  // Predicated region
  $region18: #{gpt_forward.17} parent=0 // pred_check
    %p70 = pneg %p15
  $region19: #{gpt_forward.17} parent=0 // pred_check_branch
    %72 = sbr.rel (%p70) target = $region21
  $region20: #{gpt_forward.17} parent=0 // pred_region
    %v73 = vld [vmem:[#allocation2] sm:$0xff]
    %v74 = vld [vmem:[#allocation2 + $0x8] sm:$0xff]
    %v75 = vld [vmem:[%s2] sm:$0x1]
    %v77 = vperm.slane %v75, 0
    %v79 = vadd.f32 %v73, %v77
    %v80 = vadd.f32 %v74, %v77
    %v81 = vpack.c.bf16 %v79, %v79
    %v82 = vpack.c.bf16 %v80, %v80
    %vm83 = vcmask 781312
    %84 = vst.msk [vmem:[%s3] sm:$0xf] %vm83, %v81
    %85 = vst.msk [vmem:[%s3 + $0x4] sm:$0xf] %vm83, %v82
  $region21: #{gpt_forward.17} parent=0 // pred_fallthru
    _
  // Predicated region
  $region22: #{gpt_forward.17} parent=0 // pred_check
    _
  $region23: #{gpt_forward.17} parent=0 // pred_check_branch
    %87 = sbr.rel (0) target = $region25
  $region24: #{gpt_forward.17} parent=0 // pred_region
    _
  $region25: #{gpt_forward.17} parent=0 // pred_fallthru
    _
  // Predicated region
  $region26: #{gpt_forward.17} parent=0 // pred_check
    _
  $region27: #{gpt_forward.17} parent=0 // pred_check_branch
    %89 = sbr.rel (0) target = $region29
  $region28: #{gpt_forward.17} parent=0 // pred_region
    _
  $region29: #{gpt_forward.17} parent=0 // pred_fallthru
    _

// kernel: gpt_forward.16
$region0: #{gpt_forward.16}
  #allocation0 [shape = 'u32[]', space=smem, size = 0x4, offset = 0x4, fixed_abs, tag = 'smem constant byte address 0x4 - core index']
  #allocation1 [shape = 'u32[72,128]{1,0:T(1,128)}', space=vmem, size = 0x9000, scoped, tag = 'internal scratch']
  %s0 = inlined_call_operand.vmem [shape: f32[16,32], index: 0, kind: input, shape index: {}]
  %s1 = inlined_call_operand.vmem [shape: f32[1,32], index: 1, kind: input, shape index: {}]
  %s2 = inlined_call_operand.vmem [shape: f32[1,32], index: 2, kind: input, shape index: {}]
  %s3 = inlined_call_operand.vmem [shape: bf16[16,32], index: 3, kind: output, shape index: {}]
  %s4 = sld [smem:[#allocation0]]
  $region22: #{gpt_forward.16} parent=0
    _
  %s6 = ssub.s32 1, %s4
  %s7 = scalar_select 0, %s6, %s4
  // Predicated region
  $region2: #{gpt_forward.16} parent=0 // pred_check
    _
  $region3: #{gpt_forward.16} parent=0 // pred_check_branch
    %9 = sbr.rel (0) target = $region5
  $region4: #{gpt_forward.16} parent=0 // pred_region
    _
  $region5: #{gpt_forward.16} parent=0 // pred_fallthru
    _
  // Predicated region
  $region6: #{gpt_forward.16} parent=0 // pred_check
    _
  $region7: #{gpt_forward.16} parent=0 // pred_check_branch
    %11 = sbr.rel (0) target = $region9
  $region8: #{gpt_forward.16} parent=0 // pred_region
    _
  $region9: #{gpt_forward.16} parent=0 // pred_fallthru
    _
  // Predicated region
  $region10: #{gpt_forward.16} parent=0 // pred_check
    _
  $region11: #{gpt_forward.16} parent=0 // pred_check_branch
    %13 = sbr.rel (0) target = $region13
  $region12: #{gpt_forward.16} parent=0 // pred_region
    _
  $region13: #{gpt_forward.16} parent=0 // pred_fallthru
    _
  %v14 = vld [vmem:[%s0] sm:$0xff]
  %v15 = vld [vmem:[%s0 + $0x8] sm:$0xff]
  %vm16 = vcmask 261120
  %v17 = vsel %vm16, %v14, 0.0
  %18 = vadd.xlane.f32.xlu0 %v17
  %v19 = vpop.xlane.xlu0 %18
  %v20 = vsel %vm16, %v15, 0.0
  %21 = vadd.xlane.f32.xlu0 %v20
  %v22 = vpop.xlane.xlu0 %21
  %v23 = vrcp.pop 32.0
  %v24 = vmul.f32 32.0, %v23
  %v25 = vsub.f32 1.0, %v24
  %v26 = vmul.f32 %v23, %v25
  %v27 = vadd.f32 %v23, %v26
  %vm28 = vweird.f32 %v23
  %v29 = vsel %vm28, %v23, %v27
  %v30 = vmul.f32 %v19, %v29
  %v31 = vmul.f32 %v22, %v29
  %v32 = vsub.f32 %v14, %v30
  %v33 = vsub.f32 %v15, %v31
  %v34 = vmul.f32 %v32, %v32
  %v35 = vmul.f32 %v33, %v33
  %v36 = vsel %vm16, %v34, 0.0
  %37 = vadd.xlane.f32.xlu0 %v36
  %v38 = vpop.xlane.xlu0 %37
  %v39 = vsel %vm16, %v35, 0.0
  %40 = vadd.xlane.f32.xlu0 %v39
  %v41 = vpop.xlane.xlu0 %40
  %v42 = vmul.f32 %v38, %v29
  %v43 = vmul.f32 %v41, %v29
  %v44 = vadd.f32 %v42, 1e-05
  %v45 = vadd.f32 %v43, 1e-05
  %v46 = vrsqrt.pop %v44
  %v47 = vmul.f32 %v46, %v44
  %v48 = vmul.f32 %v47, %v46
  %v49 = vmul.f32 0.5, %v48
  %v50 = vsub.f32 1.5, %v49
  %v51 = vmul.f32 %v46, %v50
  %vm52 = vweird.f32 %v44
  %vm53 = vweird.f32 %v46
  %vm54 = vmor %vm52, %vm53
  %v55 = vsel %vm54, %v46, %v51
  %v56 = vrsqrt.pop %v45
  %v57 = vmul.f32 %v56, %v45
  %v58 = vmul.f32 %v57, %v56
  %v59 = vmul.f32 0.5, %v58
  %v60 = vsub.f32 1.5, %v59
  %v61 = vmul.f32 %v56, %v60
  %vm62 = vweird.f32 %v45
  %vm63 = vweird.f32 %v56
  %vm64 = vmor %vm62, %vm63
  %v65 = vsel %vm64, %v56, %v61
  %v66 = vmul.f32 %v32, %v55
  %v67 = vmul.f32 %v33, %v65
  %v68 = vld [vmem:[%s1] sm:$0x1]
  %v70 = vperm.slane %v68, 0
  %v72 = vmul.f32 %v66, %v70
  %v73 = vmul.f32 %v67, %v70
  %v74 = vld [vmem:[%s2] sm:$0x1]
  %v76 = vperm.slane %v74, 0
  %v78 = vadd.f32 %v72, %v76
  %v79 = vadd.f32 %v73, %v76
  %v80 = vpack.c.bf16 %v78, %v78
  %v81 = vpack.c.bf16 %v79, %v79
  %vm82 = vcmask 257024
  %83 = vst.msk [vmem:[%s3] sm:$0xf] %vm82, %v80
  %84 = vst.msk [vmem:[%s3 + $0x4] sm:$0xf] %vm82, %v81
  // Predicated region
  $region14: #{gpt_forward.16} parent=0 // pred_check
    _
  $region15: #{gpt_forward.16} parent=0 // pred_check_branch
    %86 = sbr.rel (0) target = $region17
  $region16: #{gpt_forward.16} parent=0 // pred_region
    _
  $region17: #{gpt_forward.16} parent=0 // pred_fallthru
    _
  // Predicated region
  $region18: #{gpt_forward.16} parent=0 // pred_check
    _
  $region19: #{gpt_forward.16} parent=0 // pred_check_branch
    %88 = sbr.rel (0) target = $region21
  $region20: #{gpt_forward.16} parent=0 // pred_region
    _
  $region21: #{gpt_forward.16} parent=0 // pred_fallthru
    _

// kernel: gpt_forward.18
$region0: #{gpt_forward.18}
  #allocation0 [shape = 'u32[]', space=smem, size = 0x4, offset = 0x4, fixed_abs, tag = 'smem constant byte address 0x4 - core index']
  #allocation1 [shape = 'u32[72,128]{1,0:T(1,128)}', space=vmem, size = 0x9000, scoped, tag = 'internal scratch']
  #allocation2 [shape = 'f32[8,1]{1,0:T(8,128)}', space=vmem, size = 0x1000, scoped, tag = 'scratch operand']
  #allocation3 [shape = 'f32[8,1]{1,0:T(8,128)}', space=vmem, size = 0x1000, scoped, tag = 'scratch operand']
  #allocation4 [shape = 'f32[8,8]{1,0:T(8,128)}', space=vmem, size = 0x1000, scoped, tag = 'scratch operand']
  %s0 = inlined_call_operand.vmem [shape: bf16[2,4,8,8], index: 0, kind: input, shape index: {}]
  %s1 = inlined_call_operand.vmem [shape: bf16[2,4,8,8], index: 1, kind: input, shape index: {}]
  %s2 = inlined_call_operand.vmem [shape: bf16[2,4,8,8], index: 2, kind: input, shape index: {}]
  %s3 = inlined_call_operand.vmem [shape: bf16[2,4,8,8], index: 3, kind: output, shape index: {}]
  %s4 = sld [smem:[#allocation0]]
  $region57: #{gpt_forward.18} parent=0
    _
  %s6 = ssub.s32 1, %s4
  %s7 = scalar_select 0, %s6, %s4
  loop: start=0, step=1, limit=10
  $region2: #{gpt_forward.18} parent=0 // loop_pre_header
    _
  $region3: #{gpt_forward.18} parent=0 // loop_header
    %s9 = sphi 0, %s13
    %p10 = scmp.ge.s32.totalorder %s9, 10
    %s16 = sphi 0, %s42
    %s17 = sphi 0, %s38
    %s18 = sphi 0, %s34
    %s19 = sphi 0, %s30
    %s20 = sphi 0, %s16
    %s21 = sphi 0, %s17
    %s22 = sphi 0, %s18
    %s23 = sphi 0, %s19
    %s24 = sphi 0, %s20
    %s25 = sphi 0, %s21
    %s26 = sphi 0, %s22
    %s27 = sphi 0, %s23
    %s49 = sphi 0, %s51
    %s52 = sphi 0, %s49
    %s53 = sphi 0, %s52
    %s69 = sphi 0, %s53
    %s79 = sphi 0, %s81
    %s82 = sphi 0, %s79
    %s83 = sphi 0, %s82
    %s99 = sphi 0, %s83
    %s109 = sphi 0, %s111
    %s112 = sphi 0, %s109
    %s113 = sphi 0, %s112
    %s129 = sphi 0, %s113
    %s139 = sphi 0, %s141
    %s142 = sphi 0, %s139
    %s143 = sphi 0, %s142
    %s159 = sphi 0, %s143
  $region4: #{gpt_forward.18} parent=0 // loop_header_branch
    %12 = sbr.rel (%p10) target = $region8
  $region5: #{gpt_forward.18} parent=0 // loop_body
    %s14 = ssub.s32 %s9, 1
    %s15 = ssub.s32 %s9, 2
    %s28 = sadd.s32 1, %s19
    %p29 = scmp.ge.s32.totalorder %s28, 1
    %s30 = scalar_select %p29, 0, %s28
    %s31 = sadd.s32 1, %s18
    %s32 = scalar_select %p29, %s31, %s18
    %p33 = scmp.ge.s32.totalorder %s32, 1
    %s34 = scalar_select %p33, 0, %s32
    %s35 = sadd.s32 1, %s17
    %s36 = scalar_select %p33, %s35, %s17
    %p37 = scmp.ge.s32.totalorder %s36, 4
    %s38 = scalar_select %p37, 0, %s36
    %s39 = sadd.s32 1, %s16
    %s40 = scalar_select %p37, %s39, %s16
    %p41 = scmp.ge.s32.totalorder %s40, 2
    %s42 = scalar_select %p41, 0, %s40
    %s43 = ssub.s32 %s16, %s42
    %s44 = ssub.s32 %s17, %s38
    %s45 = sor.u32 %s43, %s44
    %s46 = ssub.s32 %s18, %s34
    %s47 = sor.u32 %s45, %s46
    %p48 = scmp.eq.s32.totalorder %s47, 0
    %s50 = sadd.s32 %s49, 1
    %s51 = scalar_select %p48, %s49, %s50
    %p54 = pneg %p48
    %p55 = scmp.eq.s32.totalorder %s9, 7
    %p56 = por %p54, %p55
    %p57 = scmp.ne.s32.totalorder %s49, %s52
    %p58 = scmp.eq.s32.totalorder %s9, 0
    %p59 = por %p57, %p58
    %p60 = scmp.ne.s32.totalorder %s49, %s52
    %p61 = scmp.eq.s32.totalorder %s14, 7
    %p62 = por %p60, %p61
    %p63 = scmp.ne.s32.totalorder %s52, %s53
    %p64 = scmp.eq.s32.totalorder %s14, 0
    %p65 = por %p63, %p64
    %p66 = scmp.ne.s32.totalorder %s52, %s53
    %p67 = scmp.eq.s32.totalorder %s15, 7
    %p68 = por %p66, %p67
    %p70 = scmp.ne.s32.totalorder %s53, %s69
    %p71 = scmp.eq.s32.totalorder %s15, 0
    %p72 = por %p70, %p71
    %s73 = ssub.s32 %s16, %s42
    %s74 = ssub.s32 %s17, %s38
    %s75 = sor.u32 %s73, %s74
    %s76 = ssub.s32 %s19, %s30
    %s77 = sor.u32 %s75, %s76
    %p78 = scmp.eq.s32.totalorder %s77, 0
    %s80 = sadd.s32 %s79, 1
    %s81 = scalar_select %p78, %s79, %s80
    %p84 = pneg %p78
    %p85 = scmp.eq.s32.totalorder %s9, 7
    %p86 = por %p84, %p85
    %p87 = scmp.ne.s32.totalorder %s79, %s82
    %p88 = scmp.eq.s32.totalorder %s9, 0
    %p89 = por %p87, %p88
    %p90 = scmp.ne.s32.totalorder %s79, %s82
    %p91 = scmp.eq.s32.totalorder %s14, 7
    %p92 = por %p90, %p91
    %p93 = scmp.ne.s32.totalorder %s82, %s83
    %p94 = scmp.eq.s32.totalorder %s14, 0
    %p95 = por %p93, %p94
    %p96 = scmp.ne.s32.totalorder %s82, %s83
    %p97 = scmp.eq.s32.totalorder %s15, 7
    %p98 = por %p96, %p97
    %p100 = scmp.ne.s32.totalorder %s83, %s99
    %p101 = scmp.eq.s32.totalorder %s15, 0
    %p102 = por %p100, %p101
    %s103 = ssub.s32 %s16, %s42
    %s104 = ssub.s32 %s17, %s38
    %s105 = sor.u32 %s103, %s104
    %s106 = ssub.s32 %s19, %s30
    %s107 = sor.u32 %s105, %s106
    %p108 = scmp.eq.s32.totalorder %s107, 0
    %s110 = sadd.s32 %s109, 1
    %s111 = scalar_select %p108, %s109, %s110
    %p114 = pneg %p108
    %p115 = scmp.eq.s32.totalorder %s9, 7
    %p116 = por %p114, %p115
    %p117 = scmp.ne.s32.totalorder %s109, %s112
    %p118 = scmp.eq.s32.totalorder %s9, 0
    %p119 = por %p117, %p118
    %p120 = scmp.ne.s32.totalorder %s109, %s112
    %p121 = scmp.eq.s32.totalorder %s14, 7
    %p122 = por %p120, %p121
    %p123 = scmp.ne.s32.totalorder %s112, %s113
    %p124 = scmp.eq.s32.totalorder %s14, 0
    %p125 = por %p123, %p124
    %p126 = scmp.ne.s32.totalorder %s112, %s113
    %p127 = scmp.eq.s32.totalorder %s15, 7
    %p128 = por %p126, %p127
    %p130 = scmp.ne.s32.totalorder %s113, %s129
    %p131 = scmp.eq.s32.totalorder %s15, 0
    %p132 = por %p130, %p131
    %s133 = ssub.s32 %s16, %s42
    %s134 = ssub.s32 %s17, %s38
    %s135 = sor.u32 %s133, %s134
    %s136 = ssub.s32 %s18, %s34
    %s137 = sor.u32 %s135, %s136
    %p138 = scmp.eq.s32.totalorder %s137, 0
    %s140 = sadd.s32 %s139, 1
    %s141 = scalar_select %p138, %s139, %s140
    %p144 = pneg %p138
    %p145 = scmp.eq.s32.totalorder %s9, 7
    %p146 = por %p144, %p145
    %p147 = scmp.ne.s32.totalorder %s139, %s142
    %p148 = scmp.eq.s32.totalorder %s9, 0
    %p149 = por %p147, %p148
    %p150 = scmp.ne.s32.totalorder %s139, %s142
    %p151 = scmp.eq.s32.totalorder %s14, 7
    %p152 = por %p150, %p151
    %p153 = scmp.ne.s32.totalorder %s142, %s143
    %p154 = scmp.eq.s32.totalorder %s14, 0
    %p155 = por %p153, %p154
    %p156 = scmp.ne.s32.totalorder %s142, %s143
    %p157 = scmp.eq.s32.totalorder %s15, 7
    %p158 = por %p156, %p157
    %p160 = scmp.ne.s32.totalorder %s143, %s159
    %p161 = scmp.eq.s32.totalorder %s15, 0
    %p162 = por %p160, %p161
    %p163 = scmp.le.s32.totalorder 1, %s9
    %p164 = scmp.lt.s32.totalorder %s9, 9
    %p165 = pnand %p163, %p164
    %p166 = pneg %p165
    // Predicated region
    $region9: #{gpt_forward.18} parent=5 // pred_check
      _
    $region10: #{gpt_forward.18} parent=5 // pred_check_branch
      %168 = sbr.rel (%p165) target = $region12
    $region11: #{gpt_forward.18} parent=5 // pred_region
      %s169 = ssub.s32 %s9, 1
    $region12: #{gpt_forward.18} parent=5 // pred_fallthru
      _
    %p170 = scmp.lt.s32.totalorder %s9, 8
    // Predicated region
    $region13: #{gpt_forward.18} parent=5 // pred_check
      %p171 = pneg %p170
    $region14: #{gpt_forward.18} parent=5 // pred_check_branch
      %173 = sbr.rel (%p171) target = $region16
    $region15: #{gpt_forward.18} parent=5 // pred_region
      // Predicated region
      $region17: #{gpt_forward.18} parent=15 // pred_check
        %p174 = pneg %p59
      $region18: #{gpt_forward.18} parent=15 // pred_check_branch
        %176 = sbr.rel (%p174) target = $region20
      $region19: #{gpt_forward.18} parent=15 // pred_region
        %p177 = scmp.lt.s32.totalorder %s16, 1
        %s178 = scalar_select %p177, %s16, 1
        %p179 = scmp.lt.s32.totalorder %s17, 3
        %s180 = scalar_select %p179, %s17, 3
        %p181 = scmp.lt.s32.totalorder %s18, 0
        %s182 = scalar_select %p181, %s18, 0
        %s183 = sadd.s32 %s182, %s180
        %s184 = smul.addr %s178, 4
        %s185 = sadd.s32 %s183, %s184
        %s186 = smul.addr %s185, 4
        %s187 = scalar_lea.vmem %s0, %s186
      $region20: #{gpt_forward.18} parent=15 // pred_fallthru
        _
      // Predicated region
      $region21: #{gpt_forward.18} parent=15 // pred_check
        %p188 = pneg %p89
      $region22: #{gpt_forward.18} parent=15 // pred_check_branch
        %190 = sbr.rel (%p188) target = $region24
      $region23: #{gpt_forward.18} parent=15 // pred_region
        %p191 = scmp.lt.s32.totalorder %s16, 1
        %s192 = scalar_select %p191, %s16, 1
        %p193 = scmp.lt.s32.totalorder %s17, 3
        %s194 = scalar_select %p193, %s17, 3
        %p195 = scmp.lt.s32.totalorder %s19, 0
        %s196 = scalar_select %p195, %s19, 0
        %s197 = sadd.s32 %s196, %s194
        %s198 = smul.addr %s192, 4
        %s199 = sadd.s32 %s197, %s198
        %s200 = smul.addr %s199, 4
        %s201 = scalar_lea.vmem %s1, %s200
      $region24: #{gpt_forward.18} parent=15 // pred_fallthru
        _
      // Predicated region
      $region25: #{gpt_forward.18} parent=15 // pred_check
        %p202 = pneg %p119
      $region26: #{gpt_forward.18} parent=15 // pred_check_branch
        %204 = sbr.rel (%p202) target = $region28
      $region27: #{gpt_forward.18} parent=15 // pred_region
        %p205 = scmp.lt.s32.totalorder %s16, 1
        %s206 = scalar_select %p205, %s16, 1
        %p207 = scmp.lt.s32.totalorder %s17, 3
        %s208 = scalar_select %p207, %s17, 3
        %p209 = scmp.lt.s32.totalorder %s19, 0
        %s210 = scalar_select %p209, %s19, 0
        %s211 = sadd.s32 %s210, %s208
        %s212 = smul.addr %s206, 4
        %s213 = sadd.s32 %s211, %s212
        %s214 = smul.addr %s213, 4
        %s215 = scalar_lea.vmem %s2, %s214
      $region28: #{gpt_forward.18} parent=15 // pred_fallthru
        _
    $region16: #{gpt_forward.18} parent=5 // pred_fallthru
      _
    %p216 = scmp.le.s32.totalorder 1, %s9
    %p217 = scmp.lt.s32.totalorder %s9, 9
    %p218 = pnand %p216, %p217
    %p219 = pneg %p218
    // Predicated region
    $region29: #{gpt_forward.18} parent=5 // pred_check
      _
    $region30: #{gpt_forward.18} parent=5 // pred_check_branch
      %221 = sbr.rel (%p218) target = $region32
    $region31: #{gpt_forward.18} parent=5 // pred_region
      %s222 = ssub.s32 %s9, 1
      %p223 = scmp.lt.s32.totalorder %s20, 1
      %s224 = scalar_select %p223, %s20, 1
      %p225 = scmp.lt.s32.totalorder %s21, 3
      %s226 = scalar_select %p225, %s21, 3
      %p227 = scmp.lt.s32.totalorder %s22, 0
      %s228 = scalar_select %p227, %s22, 0
      %s229 = sadd.s32 %s228, %s226
      %s230 = smul.addr %s224, 4
      %s231 = sadd.s32 %s229, %s230
      %s232 = smul.addr %s231, 4
      %s233 = scalar_lea.vmem %s0, %s232
      %p234 = pneg %p65
      %p235 = pneg %p62
      %p236 = scmp.lt.s32.totalorder %s20, 1
      %s237 = scalar_select %p236, %s20, 1
      %p238 = scmp.lt.s32.totalorder %s21, 3
      %s239 = scalar_select %p238, %s21, 3
      %p240 = scmp.lt.s32.totalorder %s23, 0
      %s241 = scalar_select %p240, %s23, 0
      %s242 = sadd.s32 %s241, %s239
      %s243 = smul.addr %s237, 4
      %s244 = sadd.s32 %s242, %s243
      %s245 = smul.addr %s244, 4
      %s246 = scalar_lea.vmem %s1, %s245
      %p247 = pneg %p95
      %p248 = pneg %p92
      %p249 = scmp.lt.s32.totalorder %s20, 1
      %s250 = scalar_select %p249, %s20, 1
      %p251 = scmp.lt.s32.totalorder %s21, 3
      %s252 = scalar_select %p251, %s21, 3
      %p253 = scmp.lt.s32.totalorder %s23, 0
      %s254 = scalar_select %p253, %s23, 0
      %s255 = sadd.s32 %s254, %s252
      %s256 = smul.addr %s250, 4
      %s257 = sadd.s32 %s255, %s256
      %s258 = smul.addr %s257, 4
      %s259 = scalar_lea.vmem %s2, %s258
      %p260 = pneg %p125
      %p261 = pneg %p122
      %p262 = pneg %p155
      %p263 = pneg %p152
      %p264 = scmp.lt.s32.totalorder %s20, 1
      %s265 = scalar_select %p264, %s20, 1
      %p266 = scmp.lt.s32.totalorder %s21, 3
      %s267 = scalar_select %p266, %s21, 3
      %p268 = scmp.lt.s32.totalorder %s22, 0
      %s269 = scalar_select %p268, %s22, 0
      %s270 = sadd.s32 %s269, %s267
      %s271 = smul.addr %s265, 4
      %s272 = sadd.s32 %s270, %s271
      %s273 = smul.addr %s272, 4
      %s274 = scalar_lea.vmem %s3, %s273
      %p275 = scmp.lt.s32.totalorder %s20, 1
      %s276 = scalar_select %p275, %s20, 1
      %p277 = scmp.lt.s32.totalorder %s21, 3
      %s278 = scalar_select %p277, %s21, 3
      %p279 = scmp.lt.s32.totalorder %s22, 0
      %s280 = scalar_select %p279, %s22, 0
      %s281 = sadd.s32 %s280, %s278
      %s282 = smul.addr %s276, 4
      %s283 = sadd.s32 %s281, %s282
      %s284 = smul.addr %s283, 4
      %s285 = scalar_lea.vmem %s0, %s284
      %p286 = scmp.lt.s32.totalorder %s20, 1
      %s287 = scalar_select %p286, %s20, 1
      %p288 = scmp.lt.s32.totalorder %s21, 3
      %s289 = scalar_select %p288, %s21, 3
      %p290 = scmp.lt.s32.totalorder %s23, 0
      %s291 = scalar_select %p290, %s23, 0
      %s292 = sadd.s32 %s291, %s289
      %s293 = smul.addr %s287, 4
      %s294 = sadd.s32 %s292, %s293
      %s295 = smul.addr %s294, 4
      %s296 = scalar_lea.vmem %s1, %s295
      %p297 = scmp.lt.s32.totalorder %s20, 1
      %s298 = scalar_select %p297, %s20, 1
      %p299 = scmp.lt.s32.totalorder %s21, 3
      %s300 = scalar_select %p299, %s21, 3
      %p301 = scmp.lt.s32.totalorder %s23, 0
      %s302 = scalar_select %p301, %s23, 0
      %s303 = sadd.s32 %s302, %s300
      %s304 = smul.addr %s298, 4
      %s305 = sadd.s32 %s303, %s304
      %s306 = smul.addr %s305, 4
      %s307 = scalar_lea.vmem %s2, %s306
      %p308 = scmp.lt.s32.totalorder %s20, 1
      %s309 = scalar_select %p308, %s20, 1
      %p310 = scmp.lt.s32.totalorder %s21, 3
      %s311 = scalar_select %p310, %s21, 3
      %p312 = scmp.lt.s32.totalorder %s22, 0
      %s313 = scalar_select %p312, %s22, 0
      %s314 = sadd.s32 %s313, %s311
      %s315 = smul.addr %s309, 4
      %s316 = sadd.s32 %s314, %s315
      %s317 = smul.addr %s316, 4
      %s318 = scalar_lea.vmem %s3, %s317
      %p320 = scmp.eq.s32.totalorder %s23, 0
      // Predicated region
      $region33: #{gpt_forward.18} parent=31 // pred_check
        %p321 = pneg %p320
      $region34: #{gpt_forward.18} parent=31 // pred_check_branch
        %323 = sbr.rel (%p321) target = $region36
      $region35: #{gpt_forward.18} parent=31 // pred_region
        %vm324 = vcmask 7168
        %325 = vst.msk [vmem:[#allocation2] sm:$0xff] %vm324, -inf
        %326 = vst.msk [vmem:[#allocation3] sm:$0xff] %vm324, 0.0
        %vm327 = vcmask 64512
        %328 = vst.msk [vmem:[#allocation4] sm:$0xff] %vm327, 0.0
      $region36: #{gpt_forward.18} parent=31 // pred_fallthru
        _
      %s329 = smul.u32 %s23, 8
      %s330 = smul.u32 %s22, 8
      %s331 = sadd.s32 %s330, 7
      %p332 = scmp.le.s32.totalorder %s329, %s331
      // Predicated region
      $region37: #{gpt_forward.18} parent=31 // pred_check
        %p333 = pneg %p332
      $region38: #{gpt_forward.18} parent=31 // pred_check_branch
        %335 = sbr.rel (%p333) target = $region40
      $region39: #{gpt_forward.18} parent=31 // pred_region
        %v336 = vld [vmem:[%s285] sm:$0xf]
        %v337 = vunpack.c.l.bf16 %v336
        %v338 = vmul.f32 %v337, 0.35355338
        %v339 = vpack.c.bf16 %v338, %v338
        %v340 = vld [vmem:[%s296] sm:$0xf]
        %v341 = vld [vmem:[%s307] sm:$0xf]
        %vm342 = vcmask 64512
        %v344 = vsel %vm342, %v339, 0
        %v347 = vsel %vm342, %v340, 0
        %349 = vmatpush.bf16.xpose.msra.mxu0 0
        %350 = vmatpush.bf16.xpose.msra.mxu0 0
        %351 = vmatpush.bf16.xpose.msra.mxu0 0
        %352 = vmatpush.bf16.xpose.msra.mxu0 0
        %353 = vmatpush.bf16.xpose.msra.mxu0 0
        %354 = vmatpush.bf16.xpose.msra.mxu0 0
        %355 = vmatpush.bf16.xpose.msra.mxu0 0
        %356 = vmatpush.bf16.xpose.msra.mxu0 %v347
        %357 = vmatmul.bf16.gmra.mxu0 %v344
        %v358 = vpop.f32.mrf.mxu0
        %v359 = vadd.f32 0.0, %v358
        %v360 = vpop.f32.mrf.mxu0
        %361 = vdwg.mxu0
        %v362 = vlaneseq
        %v363 = vshrl.u32 %v362, 7
        %v364 = vstv %s330
        %v365 = vadd.s32 %v364, %v363
        %v366 = vlaneseq
        %v367 = vand.u32 %v366, 127
        %v368 = vstv %s329
        %v369 = vadd.s32 %v368, %v367
        %vm370 = vcmp.le.s32.totalorder %v369, %v365
        %v371 = vsel %vm370, %v359, -1e+30
        %v372 = vld [vmem:[#allocation2] sm:$0xff]
        %v373 = vsel %vm342, %v371, -inf
        %374 = vmax.xlane.f32.xlu0 %v373
        %v375 = vpop.xlane.xlu0 %374
        %v376 = vmax.f32 %v372, %v375
        %v377 = vsub.f32 %v372, %v376
        %v378 = vmul.f32 %v377, 1.442695
        %v379 = vpow.pop %v378
        %381 = vset.pattern.permute.xlu0 0
        %382 = vperm.xlu0 %381, %v376
        %v383 = vpop.permute.xlu0 %382
        %v385 = vsub.f32 %v371, %v383
        %v386 = vmul.f32 %v385, 1.442695
        %v387 = vpow.pop %v386
        %v388 = vld [vmem:[#allocation3] sm:$0xff]
        %v389 = vmul.f32 %v379, %v388
        %v390 = vsel %vm342, %v387, 0.0
        %391 = vadd.xlane.f32.xlu0 %v390
        %v392 = vpop.xlane.xlu0 %391
        %v393 = vadd.f32 %v389, %v392
        %vm394 = vcmask 7168
        %395 = vst.msk [vmem:[#allocation3] sm:$0xff] %vm394, %v393
        %v396 = vld [vmem:[#allocation4] sm:$0xff]
        %398 = vset.pattern.permute.xlu0 0
        %399 = vperm.xlu0 %398, %v379
        %v400 = vpop.permute.xlu0 %399
        %v402 = vmul.f32 %v400, %v396
        %v403 = vpack.c.bf16 %v387, %v387
        %v405 = vsel %vm342, %v403, 0
        %vm407 = vcmask 1043456
        %v409 = vsel %vm407, %v341, 0
        %411 = vmatpush.bf16.msra.mxu0 0
        %412 = vmatpush.bf16.msra.mxu0 0
        %413 = vmatpush.bf16.msra.mxu0 0
        %414 = vmatpush.bf16.msra.mxu0 0
        %415 = vmatpush.bf16.msra.mxu0 0
        %416 = vmatpush.bf16.msra.mxu0 0
        %417 = vmatpush.bf16.msra.mxu0 0
        %418 = vmatpush.bf16.msra.mxu0 %v409
        %419 = vmatmul.bf16.gmra.mxu0 %v405
        %v420 = vpop.f32.mrf.mxu0
        %v421 = vadd.f32 0.0, %v420
        %v422 = vpop.f32.mrf.mxu0
        %423 = vdwg.mxu0
        %v424 = vadd.f32 %v402, %v421
        %425 = vst.msk [vmem:[#allocation4] sm:$0xff] %vm342, %v424
        %426 = vst.msk [vmem:[#allocation2] sm:$0xff] %vm394, %v376
      $region40: #{gpt_forward.18} parent=31 // pred_fallthru
        _
      // Predicated region
      $region41: #{gpt_forward.18} parent=31 // pred_check
        %p427 = pneg %p320
      $region42: #{gpt_forward.18} parent=31 // pred_check_branch
        %429 = sbr.rel (%p427) target = $region44
      $region43: #{gpt_forward.18} parent=31 // pred_region
        %v430 = vld [vmem:[#allocation3] sm:$0xff]
        %v431 = vrcp.pop %v430
        %v432 = vld [vmem:[#allocation4] sm:$0xff]
        %434 = vset.pattern.permute.xlu0 0
        %435 = vperm.xlu0 %434, %v431
        %v436 = vpop.permute.xlu0 %435
        %v438 = vmul.f32 %v432, %v436
        %v439 = vpack.c.bf16 %v438, %v438
        %vm440 = vcmask 60416
        %441 = vst.msk [vmem:[%s318] sm:$0xf] %vm440, %v439
      $region44: #{gpt_forward.18} parent=31 // pred_fallthru
        _
      %p442 = scmp.lt.s32.totalorder %s20, 1
      %s443 = scalar_select %p442, %s20, 1
      %p444 = scmp.lt.s32.totalorder %s21, 3
      %s445 = scalar_select %p444, %s21, 3
      %p446 = scmp.lt.s32.totalorder %s22, 0
      %s447 = scalar_select %p446, %s22, 0
      %s448 = sadd.s32 %s447, %s445
      %s449 = smul.addr %s443, 4
      %s450 = sadd.s32 %s448, %s449
      %s451 = smul.addr %s450, 4
      %s452 = scalar_lea.vmem %s3, %s451
      // Predicated region
      $region45: #{gpt_forward.18} parent=31 // pred_check
        %p453 = pneg %p152
      $region46: #{gpt_forward.18} parent=31 // pred_check_branch
        %455 = sbr.rel (%p453) target = $region48
      $region47: #{gpt_forward.18} parent=31 // pred_region
        _
      $region48: #{gpt_forward.18} parent=31 // pred_fallthru
        _
    $region32: #{gpt_forward.18} parent=5 // pred_fallthru
      _
    %p456 = scmp.le.s32.totalorder 2, %s9
    // Predicated region
    $region49: #{gpt_forward.18} parent=5 // pred_check
      %p457 = pneg %p456
    $region50: #{gpt_forward.18} parent=5 // pred_check_branch
      %459 = sbr.rel (%p457) target = $region52
    $region51: #{gpt_forward.18} parent=5 // pred_region
      %s460 = ssub.s32 %s9, 2
      // Predicated region
      $region53: #{gpt_forward.18} parent=51 // pred_check
        %p461 = pneg %p158
      $region54: #{gpt_forward.18} parent=51 // pred_check_branch
        %463 = sbr.rel (%p461) target = $region56
      $region55: #{gpt_forward.18} parent=51 // pred_region
        %p464 = scmp.lt.s32.totalorder %s24, 1
        %s465 = scalar_select %p464, %s24, 1
        %p466 = scmp.lt.s32.totalorder %s25, 3
        %s467 = scalar_select %p466, %s25, 3
        %p468 = scmp.lt.s32.totalorder %s26, 0
        %s469 = scalar_select %p468, %s26, 0
        %s470 = sadd.s32 %s469, %s467
        %s471 = smul.addr %s465, 4
        %s472 = sadd.s32 %s470, %s471
        %s473 = smul.addr %s472, 4
        %s474 = scalar_lea.vmem %s3, %s473
      $region56: #{gpt_forward.18} parent=51 // pred_fallthru
        _
    $region52: #{gpt_forward.18} parent=5 // pred_fallthru
      _
  $region6: #{gpt_forward.18} parent=0 // loop_footer
    %s13 = sadd.s32 1, %s9
  $region7: #{gpt_forward.18} parent=0 // loop_footer_branch
    %8 = sbr.rel target = $region3
  $region8: #{gpt_forward.18} parent=0 // loop_exit
    _

// kernel: gpt_forward.19
$region0: #{gpt_forward.19}
  #allocation0 [shape = 'u32[]', space=smem, size = 0x4, offset = 0x4, fixed_abs, tag = 'smem constant byte address 0x4 - core index']
  #allocation1 [shape = 'u32[72,128]{1,0:T(1,128)}', space=vmem, size = 0x9000, scoped, tag = 'internal scratch']
  #allocation2 [shape = 'f32[16,32]{1,0:T(8,128)}', space=vmem, size = 0x2000, scoped, tag = 'scratch operand']
  %s0 = inlined_call_operand.vmem [shape: bf16[16,32], index: 0, kind: input, shape index: {}]
  %s1 = inlined_call_operand.vmem [shape: bf16[32,32], index: 1, kind: input, shape index: {}]
  %s2 = inlined_call_operand.vmem [shape: f32[1,32], index: 2, kind: input, shape index: {}]
  %s3 = inlined_call_operand.vmem [shape: f32[16,32], index: 3, kind: input, shape index: {}]
  %s4 = inlined_call_operand.vmem [shape: f32[16,32], index: 4, kind: output, shape index: {}]
  %s5 = sld [smem:[#allocation0]]
  $region34: #{gpt_forward.19} parent=0
    _
  %s7 = ssub.s32 1, %s5
  %s8 = scalar_select 0, %s7, %s5
  // Predicated region
  $region2: #{gpt_forward.19} parent=0 // pred_check
    _
  $region3: #{gpt_forward.19} parent=0 // pred_check_branch
    %10 = sbr.rel (0) target = $region5
  $region4: #{gpt_forward.19} parent=0 // pred_region
    _
  $region5: #{gpt_forward.19} parent=0 // pred_fallthru
    _
  // Predicated region
  $region6: #{gpt_forward.19} parent=0 // pred_check
    _
  $region7: #{gpt_forward.19} parent=0 // pred_check_branch
    %12 = sbr.rel (0) target = $region9
  $region8: #{gpt_forward.19} parent=0 // pred_region
    _
  $region9: #{gpt_forward.19} parent=0 // pred_fallthru
    _
  // Predicated region
  $region10: #{gpt_forward.19} parent=0 // pred_check
    _
  $region11: #{gpt_forward.19} parent=0 // pred_check_branch
    %14 = sbr.rel (0) target = $region13
  $region12: #{gpt_forward.19} parent=0 // pred_region
    _
  $region13: #{gpt_forward.19} parent=0 // pred_fallthru
    _
  // Predicated region
  $region14: #{gpt_forward.19} parent=0 // pred_check
    _
  $region15: #{gpt_forward.19} parent=0 // pred_check_branch
    %16 = sbr.rel (0) target = $region17
  $region16: #{gpt_forward.19} parent=0 // pred_region
    _
  $region17: #{gpt_forward.19} parent=0 // pred_fallthru
    _
  %p18 = scmp.eq.s32.totalorder 0, 0
  // Predicated region
  $region18: #{gpt_forward.19} parent=0 // pred_check
    %p19 = pneg %p18
  $region19: #{gpt_forward.19} parent=0 // pred_check_branch
    %21 = sbr.rel (%p19) target = $region21
  $region20: #{gpt_forward.19} parent=0 // pred_region
    %vm22 = vcmask 261120
    %23 = vst.msk [vmem:[#allocation2] sm:$0xff] %vm22, 0.0
    %24 = vst.msk [vmem:[#allocation2 + $0x8] sm:$0xff] %vm22, 0.0
  $region21: #{gpt_forward.19} parent=0 // pred_fallthru
    _
  %v25 = vld [vmem:[#allocation2] sm:$0xff]
  %v26 = vld [vmem:[#allocation2 + $0x8] sm:$0xff]
  %v27 = vld [vmem:[%s0] sm:$0xf]
  %v28 = vld [vmem:[%s0 + $0x4] sm:$0xf]
  %v29 = vld [vmem:[%s1] sm:$0xf]
  %v30 = vld [vmem:[%s1 + $0x4] sm:$0xf]
  %v31 = vld [vmem:[%s1 + $0x8] sm:$0xf]
  %v32 = vld [vmem:[%s1 + $0xc] sm:$0xf]
  %v35 = vunpack.c.l.b16 %v27
  %v36 = vunpack.c.l.b16 %v28
  %v37 = vpack.c.b16 %v36, %v35
  %v42 = vunpack.c.l.b16 %v29
  %v43 = vunpack.c.l.b16 %v30
  %v44 = vunpack.c.l.b16 %v31
  %v45 = vunpack.c.l.b16 %v32
  %v46 = vpack.c.b16 %v43, %v42
  %v47 = vpack.c.b16 %v45, %v44
  %vm50 = vcmask 261120
  %v52 = vsel %vm50, %v37, 0
  %54 = vmatpush.bf16.msra.mxu0 0
  %55 = vmatpush.bf16.msra.mxu0 0
  %56 = vmatpush.bf16.msra.mxu0 0
  %57 = vmatpush.bf16.msra.mxu0 0
  %58 = vmatpush.bf16.msra.mxu0 0
  %59 = vmatpush.bf16.msra.mxu0 0
  %60 = vmatpush.bf16.msra.mxu0 %v47
  %61 = vmatpush.bf16.msra.mxu0 %v46
  %62 = vmatmul.bf16.gmra.mxu0 %v52
  %v63 = vpop.f32.mrf.mxu0
  %v64 = vadd.f32 0.0, %v63
  %v65 = vpop.f32.mrf.mxu0
  %v66 = vadd.f32 0.0, %v65
  %67 = vdwg.mxu0
  %v68 = vadd.f32 %v25, %v64
  %v69 = vadd.f32 %v26, %v66
  %70 = vst.msk [vmem:[#allocation2] sm:$0xff] %vm50, %v68
  %71 = vst.msk [vmem:[#allocation2 + $0x8] sm:$0xff] %vm50, %v69
  // Predicated region
  $region22: #{gpt_forward.19} parent=0 // pred_check
    %p72 = pneg %p18
  $region23: #{gpt_forward.19} parent=0 // pred_check_branch
    %74 = sbr.rel (%p72) target = $region25
  $region24: #{gpt_forward.19} parent=0 // pred_region
    %v75 = vld [vmem:[#allocation2] sm:$0xff]
    %v76 = vld [vmem:[#allocation2 + $0x8] sm:$0xff]
    %v77 = vld [vmem:[%s2] sm:$0x1]
    %v79 = vperm.slane %v77, 0
    %v81 = vadd.f32 %v75, %v79
    %v82 = vadd.f32 %v76, %v79
    %v83 = vld [vmem:[%s3] sm:$0xff]
    %v84 = vld [vmem:[%s3 + $0x8] sm:$0xff]
    %v85 = vadd.f32 %v81, %v83
    %v86 = vadd.f32 %v82, %v84
    %87 = vst.msk [vmem:[%s4] sm:$0xff] %vm50, %v85
    %88 = vst.msk [vmem:[%s4 + $0x8] sm:$0xff] %vm50, %v86
  $region25: #{gpt_forward.19} parent=0 // pred_fallthru
    _
  // Predicated region
  $region26: #{gpt_forward.19} parent=0 // pred_check
    _
  $region27: #{gpt_forward.19} parent=0 // pred_check_branch
    %90 = sbr.rel (0) target = $region29
  $region28: #{gpt_forward.19} parent=0 // pred_region
    _
  $region29: #{gpt_forward.19} parent=0 // pred_fallthru
    _
  // Predicated region
  $region30: #{gpt_forward.19} parent=0 // pred_check
    _
  $region31: #{gpt_forward.19} parent=0 // pred_check_branch
    %92 = sbr.rel (0) target = $region33
  $region32: #{gpt_forward.19} parent=0 // pred_region
    _
  $region33: #{gpt_forward.19} parent=0 // pred_fallthru
    _

// kernel: gpt_forward.21
$region0: #{gpt_forward.21}
  #allocation0 [shape = 'u32[]', space=smem, size = 0x4, offset = 0x4, fixed_abs, tag = 'smem constant byte address 0x4 - core index']
  #allocation1 [shape = 'u32[72,128]{1,0:T(1,128)}', space=vmem, size = 0x9000, scoped, tag = 'internal scratch']
  #allocation2 [shape = 'f32[16,128]{1,0:T(8,128)}', space=vmem, size = 0x2000, scoped, tag = 'scratch operand']
  %s0 = inlined_call_operand.vmem [shape: bf16[16,32], index: 0, kind: input, shape index: {}]
  %s1 = inlined_call_operand.vmem [shape: bf16[32,128], index: 1, kind: input, shape index: {}]
  %s2 = inlined_call_operand.vmem [shape: f32[1,128], index: 2, kind: input, shape index: {}]
  %s3 = inlined_call_operand.vmem [shape: bf16[16,128], index: 3, kind: output, shape index: {}]
  %s4 = sld [smem:[#allocation0]]
  $region30: #{gpt_forward.21} parent=0
    _
  %s6 = ssub.s32 1, %s4
  %s7 = scalar_select 0, %s6, %s4
  // Predicated region
  $region2: #{gpt_forward.21} parent=0 // pred_check
    _
  $region3: #{gpt_forward.21} parent=0 // pred_check_branch
    %9 = sbr.rel (0) target = $region5
  $region4: #{gpt_forward.21} parent=0 // pred_region
    _
  $region5: #{gpt_forward.21} parent=0 // pred_fallthru
    _
  // Predicated region
  $region6: #{gpt_forward.21} parent=0 // pred_check
    _
  $region7: #{gpt_forward.21} parent=0 // pred_check_branch
    %11 = sbr.rel (0) target = $region9
  $region8: #{gpt_forward.21} parent=0 // pred_region
    _
  $region9: #{gpt_forward.21} parent=0 // pred_fallthru
    _
  // Predicated region
  $region10: #{gpt_forward.21} parent=0 // pred_check
    _
  $region11: #{gpt_forward.21} parent=0 // pred_check_branch
    %13 = sbr.rel (0) target = $region13
  $region12: #{gpt_forward.21} parent=0 // pred_region
    _
  $region13: #{gpt_forward.21} parent=0 // pred_fallthru
    _
  %p15 = scmp.eq.s32.totalorder 0, 0
  // Predicated region
  $region14: #{gpt_forward.21} parent=0 // pred_check
    %p16 = pneg %p15
  $region15: #{gpt_forward.21} parent=0 // pred_check_branch
    %18 = sbr.rel (%p16) target = $region17
  $region16: #{gpt_forward.21} parent=0 // pred_region
    %19 = vst [vmem:[#allocation2] sm:$0xff] 0.0
    %20 = vst [vmem:[#allocation2 + $0x8] sm:$0xff] 0.0
  $region17: #{gpt_forward.21} parent=0 // pred_fallthru
    _
  %v21 = vld [vmem:[#allocation2] sm:$0xff]
  %v22 = vld [vmem:[#allocation2 + $0x8] sm:$0xff]
  %v23 = vld [vmem:[%s0] sm:$0xf]
  %v24 = vld [vmem:[%s0 + $0x4] sm:$0xf]
  %v25 = vld [vmem:[%s1] sm:$0xf]
  %v26 = vld [vmem:[%s1 + $0x4] sm:$0xf]
  %v27 = vld [vmem:[%s1 + $0x8] sm:$0xf]
  %v28 = vld [vmem:[%s1 + $0xc] sm:$0xf]
  %v31 = vunpack.c.l.b16 %v23
  %v32 = vunpack.c.l.b16 %v24
  %v33 = vpack.c.b16 %v32, %v31
  %v38 = vunpack.c.l.b16 %v25
  %v39 = vunpack.c.l.b16 %v26
  %v40 = vunpack.c.l.b16 %v27
  %v41 = vunpack.c.l.b16 %v28
  %v42 = vpack.c.b16 %v39, %v38
  %v43 = vpack.c.b16 %v41, %v40
  %vm46 = vcmask 261120
  %v48 = vsel %vm46, %v33, 0
  %50 = vmatpush.bf16.msra.mxu0 0
  %51 = vmatpush.bf16.msra.mxu0 0
  %52 = vmatpush.bf16.msra.mxu0 0
  %53 = vmatpush.bf16.msra.mxu0 0
  %54 = vmatpush.bf16.msra.mxu0 0
  %55 = vmatpush.bf16.msra.mxu0 0
  %56 = vmatpush.bf16.msra.mxu0 %v43
  %57 = vmatpush.bf16.msra.mxu0 %v42
  %58 = vmatmul.bf16.gmra.mxu0 %v48
  %v59 = vpop.f32.mrf.mxu0
  %v60 = vadd.f32 0.0, %v59
  %v61 = vpop.f32.mrf.mxu0
  %v62 = vadd.f32 0.0, %v61
  %63 = vdwg.mxu0
  %v64 = vadd.f32 %v21, %v60
  %v65 = vadd.f32 %v22, %v62
  %66 = vst [vmem:[#allocation2] sm:$0xff] %v64
  %67 = vst [vmem:[#allocation2 + $0x8] sm:$0xff] %v65
  // Predicated region
  $region18: #{gpt_forward.21} parent=0 // pred_check
    %p68 = pneg %p15
  $region19: #{gpt_forward.21} parent=0 // pred_check_branch
    %70 = sbr.rel (%p68) target = $region21
  $region20: #{gpt_forward.21} parent=0 // pred_region
    %v71 = vld [vmem:[#allocation2] sm:$0xff]
    %v72 = vld [vmem:[#allocation2 + $0x8] sm:$0xff]
    %v73 = vld [vmem:[%s2] sm:$0x1]
    %v75 = vperm.slane %v73, 0
    %v77 = vadd.f32 %v71, %v75
    %v78 = vadd.f32 %v72, %v75
    %v79 = vmul.f32 %v77, 0.5
    %v80 = vmul.f32 %v78, 0.5
    %v81 = vmul.f32 %v77, 0.70710677
    %v82 = vmul.f32 %v78, 0.70710677
    %v83 = vmul.f32 %v81, %v81
    %v84 = vmin.f32 16.0, %v83
    %v85 = vmul.f32 %v84, 2.1237322e-06
    %v86 = vadd.f32 %v85, 0.00028619796
    %v87 = vmul.f32 %v84, %v86
    %v88 = vadd.f32 %v87, 0.0036580483
    %v89 = vmul.f32 %v84, %v88
    %v90 = vadd.f32 %v89, 0.05243302
    %v91 = vmul.f32 %v84, %v90
    %v92 = vadd.f32 %v91, 0.18741608
    %v93 = vmul.f32 %v84, %v92
    %v94 = vadd.f32 %v93, 1.1283791
    %v95 = vmul.f32 %v81, %v94
    %v96 = vmul.f32 %v84, 3.8918573e-05
    %v97 = vadd.f32 %v96, 0.001143296
    %v98 = vmul.f32 %v84, %v97
    %v99 = vadd.f32 %v98, 0.014752088
    %v100 = vmul.f32 %v84, %v99
    %v101 = vadd.f32 %v100, 0.112945676
    %v102 = vmul.f32 %v84, %v101
    %v103 = vadd.f32 %v102, 0.4994258
    %v104 = vmul.f32 %v84, %v103
    %v105 = vadd.f32 %v104, 1.0
    %v106 = vrcp.pop %v105
    %v107 = vmul.f32 %v105, %v106
    %v108 = vsub.f32 1.0, %v107
    %v109 = vmul.f32 %v106, %v108
    %v110 = vadd.f32 %v106, %v109
    %vm111 = vweird.f32 %v105
    %vm112 = vweird.f32 %v106
    %vm113 = vmor %vm111, %vm112
    %v114 = vsel %vm113, %v106, %v110
    %v115 = vand.u32 2147483647, %v105
    %vm116 = vcmp.eq.f32.partialorder %v115, 8.507059e+37
    %v117 = vand.u32 %v105, 2147483648
    %v118 = vor.u32 1.1754944e-38, %v117
    %v119 = vsel %vm116, %v118, %v114
    %v120 = vmul.f32 %v95, %v119
    %v121 = vmin.f32 %v120, 1.0
    %v122 = vmax.f32 %v121, -1.0
    %v123 = vmul.f32 %v82, %v82
    %v124 = vmin.f32 16.0, %v123
    %v125 = vmul.f32 %v124, 2.1237322e-06
    %v126 = vadd.f32 %v125, 0.00028619796
    %v127 = vmul.f32 %v124, %v126
    %v128 = vadd.f32 %v127, 0.0036580483
    %v129 = vmul.f32 %v124, %v128
    %v130 = vadd.f32 %v129, 0.05243302
    %v131 = vmul.f32 %v124, %v130
    %v132 = vadd.f32 %v131, 0.18741608
    %v133 = vmul.f32 %v124, %v132
    %v134 = vadd.f32 %v133, 1.1283791
    %v135 = vmul.f32 %v82, %v134
    %v136 = vmul.f32 %v124, 3.8918573e-05
    %v137 = vadd.f32 %v136, 0.001143296
    %v138 = vmul.f32 %v124, %v137
    %v139 = vadd.f32 %v138, 0.014752088
    %v140 = vmul.f32 %v124, %v139
    %v141 = vadd.f32 %v140, 0.112945676
    %v142 = vmul.f32 %v124, %v141
    %v143 = vadd.f32 %v142, 0.4994258
    %v144 = vmul.f32 %v124, %v143
    %v145 = vadd.f32 %v144, 1.0
    %v146 = vrcp.pop %v145
    %v147 = vmul.f32 %v145, %v146
    %v148 = vsub.f32 1.0, %v147
    %v149 = vmul.f32 %v146, %v148
    %v150 = vadd.f32 %v146, %v149
    %vm151 = vweird.f32 %v145
    %vm152 = vweird.f32 %v146
    %vm153 = vmor %vm151, %vm152
    %v154 = vsel %vm153, %v146, %v150
    %v155 = vand.u32 2147483647, %v145
    %vm156 = vcmp.eq.f32.partialorder %v155, 8.507059e+37
    %v157 = vand.u32 %v145, 2147483648
    %v158 = vor.u32 1.1754944e-38, %v157
    %v159 = vsel %vm156, %v158, %v154
    %v160 = vmul.f32 %v135, %v159
    %v161 = vmin.f32 %v160, 1.0
    %v162 = vmax.f32 %v161, -1.0
    %v163 = vadd.f32 %v122, 1.0
    %v164 = vadd.f32 %v162, 1.0
    %v165 = vmul.f32 %v79, %v163
    %v166 = vmul.f32 %v80, %v164
    %v167 = vpack.c.bf16 %v165, %v165
    %v168 = vpack.c.bf16 %v166, %v166
    %169 = vst [vmem:[%s3] sm:$0xf] %v167
    %170 = vst [vmem:[%s3 + $0x4] sm:$0xf] %v168
  $region21: #{gpt_forward.21} parent=0 // pred_fallthru
    _
  // Predicated region
  $region22: #{gpt_forward.21} parent=0 // pred_check
    _
  $region23: #{gpt_forward.21} parent=0 // pred_check_branch
    %172 = sbr.rel (0) target = $region25
  $region24: #{gpt_forward.21} parent=0 // pred_region
    _
  $region25: #{gpt_forward.21} parent=0 // pred_fallthru
    _
  // Predicated region
  $region26: #{gpt_forward.21} parent=0 // pred_check
    _
  $region27: #{gpt_forward.21} parent=0 // pred_check_branch
    %174 = sbr.rel (0) target = $region29
  $region28: #{gpt_forward.21} parent=0 // pred_region
    _
  $region29: #{gpt_forward.21} parent=0 // pred_fallthru
    _

// kernel: gpt_forward.22
$region0: #{gpt_forward.22}
  #allocation0 [shape = 'u32[]', space=smem, size = 0x4, offset = 0x4, fixed_abs, tag = 'smem constant byte address 0x4 - core index']
  #allocation1 [shape = 'u32[72,128]{1,0:T(1,128)}', space=vmem, size = 0x9000, scoped, tag = 'internal scratch']
  #allocation2 [shape = 'f32[16,32]{1,0:T(8,128)}', space=vmem, size = 0x2000, scoped, tag = 'scratch operand']
  %s0 = inlined_call_operand.vmem [shape: bf16[16,128], index: 0, kind: input, shape index: {}]
  %s1 = inlined_call_operand.vmem [shape: bf16[128,32], index: 1, kind: input, shape index: {}]
  %s2 = inlined_call_operand.vmem [shape: f32[1,32], index: 2, kind: input, shape index: {}]
  %s3 = inlined_call_operand.vmem [shape: f32[16,32], index: 3, kind: input, shape index: {}]
  %s4 = inlined_call_operand.vmem [shape: f32[16,32], index: 4, kind: output, shape index: {}]
  %s5 = sld [smem:[#allocation0]]
  $region34: #{gpt_forward.22} parent=0
    _
  %s7 = ssub.s32 1, %s5
  %s8 = scalar_select 0, %s7, %s5
  // Predicated region
  $region2: #{gpt_forward.22} parent=0 // pred_check
    _
  $region3: #{gpt_forward.22} parent=0 // pred_check_branch
    %10 = sbr.rel (0) target = $region5
  $region4: #{gpt_forward.22} parent=0 // pred_region
    _
  $region5: #{gpt_forward.22} parent=0 // pred_fallthru
    _
  // Predicated region
  $region6: #{gpt_forward.22} parent=0 // pred_check
    _
  $region7: #{gpt_forward.22} parent=0 // pred_check_branch
    %12 = sbr.rel (0) target = $region9
  $region8: #{gpt_forward.22} parent=0 // pred_region
    _
  $region9: #{gpt_forward.22} parent=0 // pred_fallthru
    _
  // Predicated region
  $region10: #{gpt_forward.22} parent=0 // pred_check
    _
  $region11: #{gpt_forward.22} parent=0 // pred_check_branch
    %14 = sbr.rel (0) target = $region13
  $region12: #{gpt_forward.22} parent=0 // pred_region
    _
  $region13: #{gpt_forward.22} parent=0 // pred_fallthru
    _
  // Predicated region
  $region14: #{gpt_forward.22} parent=0 // pred_check
    _
  $region15: #{gpt_forward.22} parent=0 // pred_check_branch
    %16 = sbr.rel (0) target = $region17
  $region16: #{gpt_forward.22} parent=0 // pred_region
    _
  $region17: #{gpt_forward.22} parent=0 // pred_fallthru
    _
  %p17 = scmp.eq.s32.totalorder 0, 0
  // Predicated region
  $region18: #{gpt_forward.22} parent=0 // pred_check
    %p18 = pneg %p17
  $region19: #{gpt_forward.22} parent=0 // pred_check_branch
    %20 = sbr.rel (%p18) target = $region21
  $region20: #{gpt_forward.22} parent=0 // pred_region
    %vm21 = vcmask 261120
    %22 = vst.msk [vmem:[#allocation2] sm:$0xff] %vm21, 0.0
    %23 = vst.msk [vmem:[#allocation2 + $0x8] sm:$0xff] %vm21, 0.0
  $region21: #{gpt_forward.22} parent=0 // pred_fallthru
    _
  %v24 = vld [vmem:[#allocation2] sm:$0xff]
  %v25 = vld [vmem:[#allocation2 + $0x8] sm:$0xff]
  %v26 = vld [vmem:[%s0] sm:$0xf]
  %v27 = vld [vmem:[%s0 + $0x4] sm:$0xf]
  %v28 = vld [vmem:[%s1] sm:$0xf]
  %v29 = vld [vmem:[%s1 + $0x4] sm:$0xf]
  %v30 = vld [vmem:[%s1 + $0x8] sm:$0xf]
  %v31 = vld [vmem:[%s1 + $0xc] sm:$0xf]
  %v32 = vld [vmem:[%s1 + $0x10] sm:$0xf]
  %v33 = vld [vmem:[%s1 + $0x14] sm:$0xf]
  %v34 = vld [vmem:[%s1 + $0x18] sm:$0xf]
  %v35 = vld [vmem:[%s1 + $0x1c] sm:$0xf]
  %v36 = vld [vmem:[%s1 + $0x20] sm:$0xf]
  %v37 = vld [vmem:[%s1 + $0x24] sm:$0xf]
  %v38 = vld [vmem:[%s1 + $0x28] sm:$0xf]
  %v39 = vld [vmem:[%s1 + $0x2c] sm:$0xf]
  %v40 = vld [vmem:[%s1 + $0x30] sm:$0xf]
  %v41 = vld [vmem:[%s1 + $0x34] sm:$0xf]
  %v42 = vld [vmem:[%s1 + $0x38] sm:$0xf]
  %v43 = vld [vmem:[%s1 + $0x3c] sm:$0xf]
  %v46 = vunpack.c.l.b16 %v26
  %v47 = vunpack.c.l.b16 %v27
  %v48 = vpack.c.b16 %v47, %v46
  %v66 = vunpack.c.l.b16 %v28
  %v67 = vunpack.c.l.b16 %v29
  %v68 = vunpack.c.l.b16 %v30
  %v69 = vunpack.c.l.b16 %v31
  %v70 = vunpack.c.l.b16 %v32
  %v71 = vunpack.c.l.b16 %v33
  %v72 = vunpack.c.l.b16 %v34
  %v73 = vunpack.c.l.b16 %v35
  %v74 = vunpack.c.l.b16 %v36
  %v75 = vunpack.c.l.b16 %v37
  %v76 = vunpack.c.l.b16 %v38
  %v77 = vunpack.c.l.b16 %v39
  %v78 = vunpack.c.l.b16 %v40
  %v79 = vunpack.c.l.b16 %v41
  %v80 = vunpack.c.l.b16 %v42
  %v81 = vunpack.c.l.b16 %v43
  %v82 = vpack.c.b16 %v67, %v66
  %v83 = vpack.c.b16 %v69, %v68
  %v84 = vpack.c.b16 %v71, %v70
  %v85 = vpack.c.b16 %v73, %v72
  %v86 = vpack.c.b16 %v75, %v74
  %v87 = vpack.c.b16 %v77, %v76
  %v88 = vpack.c.b16 %v79, %v78
  %v89 = vpack.c.b16 %v81, %v80
  %98 = vmatpush.bf16.msra.mxu0 %v89
  %99 = vmatpush.bf16.msra.mxu0 %v88
  %100 = vmatpush.bf16.msra.mxu0 %v87
  %101 = vmatpush.bf16.msra.mxu0 %v86
  %102 = vmatpush.bf16.msra.mxu0 %v85
  %103 = vmatpush.bf16.msra.mxu0 %v84
  %104 = vmatpush.bf16.msra.mxu0 %v83
  %105 = vmatpush.bf16.msra.mxu0 %v82
  %106 = vmatmul.bf16.gmra.mxu0 %v48
  %v107 = vpop.f32.mrf.mxu0
  %v108 = vadd.f32 0.0, %v107
  %v109 = vpop.f32.mrf.mxu0
  %v110 = vadd.f32 0.0, %v109
  %111 = vdwg.mxu0
  %v112 = vadd.f32 %v24, %v108
  %v113 = vadd.f32 %v25, %v110
  %vm114 = vcmask 261120
  %115 = vst.msk [vmem:[#allocation2] sm:$0xff] %vm114, %v112
  %116 = vst.msk [vmem:[#allocation2 + $0x8] sm:$0xff] %vm114, %v113
  // Predicated region
  $region22: #{gpt_forward.22} parent=0 // pred_check
    %p117 = pneg %p17
  $region23: #{gpt_forward.22} parent=0 // pred_check_branch
    %119 = sbr.rel (%p117) target = $region25
  $region24: #{gpt_forward.22} parent=0 // pred_region
    %v120 = vld [vmem:[#allocation2] sm:$0xff]
    %v121 = vld [vmem:[#allocation2 + $0x8] sm:$0xff]
    %v122 = vld [vmem:[%s2] sm:$0x1]
    %v124 = vperm.slane %v122, 0
    %v126 = vadd.f32 %v120, %v124
    %v127 = vadd.f32 %v121, %v124
    %v128 = vld [vmem:[%s3] sm:$0xff]
    %v129 = vld [vmem:[%s3 + $0x8] sm:$0xff]
    %v130 = vadd.f32 %v126, %v128
    %v131 = vadd.f32 %v127, %v129
    %132 = vst.msk [vmem:[%s4] sm:$0xff] %vm114, %v130
    %133 = vst.msk [vmem:[%s4 + $0x8] sm:$0xff] %vm114, %v131
  $region25: #{gpt_forward.22} parent=0 // pred_fallthru
    _
  // Predicated region
  $region26: #{gpt_forward.22} parent=0 // pred_check
    _
  $region27: #{gpt_forward.22} parent=0 // pred_check_branch
    %135 = sbr.rel (0) target = $region29
  $region28: #{gpt_forward.22} parent=0 // pred_region
    _
  $region29: #{gpt_forward.22} parent=0 // pred_fallthru
    _
  // Predicated region
  $region30: #{gpt_forward.22} parent=0 // pred_check
    _
  $region31: #{gpt_forward.22} parent=0 // pred_check_branch
    %137 = sbr.rel (0) target = $region33
  $region32: #{gpt_forward.22} parent=0 // pred_region
    _
  $region33: #{gpt_forward.22} parent=0 // pred_fallthru
    _

// kernel: gpt_forward.30
$region0: #{gpt_forward.30}
  #allocation0 [shape = 'u32[]', space=smem, size = 0x4, offset = 0x4, fixed_abs, tag = 'smem constant byte address 0x4 - core index']
  #allocation1 [shape = 'u32[72,128]{1,0:T(1,128)}', space=vmem, size = 0x9000, scoped, tag = 'internal scratch']
  %s0 = inlined_call_operand.vmem [shape: f32[2,32], index: 0, kind: input, shape index: {}]
  %s1 = inlined_call_operand.vmem [shape: f32[1,32], index: 1, kind: input, shape index: {}]
  %s2 = inlined_call_operand.vmem [shape: f32[1,32], index: 2, kind: input, shape index: {}]
  %s3 = inlined_call_operand.vmem [shape: bf16[2,32], index: 3, kind: output, shape index: {}]
  %s4 = sld [smem:[#allocation0]]
  $region22: #{gpt_forward.30} parent=0
    _
  %s6 = ssub.s32 1, %s4
  %s7 = scalar_select 0, %s6, %s4
  // Predicated region
  $region2: #{gpt_forward.30} parent=0 // pred_check
    _
  $region3: #{gpt_forward.30} parent=0 // pred_check_branch
    %9 = sbr.rel (0) target = $region5
  $region4: #{gpt_forward.30} parent=0 // pred_region
    _
  $region5: #{gpt_forward.30} parent=0 // pred_fallthru
    _
  // Predicated region
  $region6: #{gpt_forward.30} parent=0 // pred_check
    _
  $region7: #{gpt_forward.30} parent=0 // pred_check_branch
    %11 = sbr.rel (0) target = $region9
  $region8: #{gpt_forward.30} parent=0 // pred_region
    _
  $region9: #{gpt_forward.30} parent=0 // pred_fallthru
    _
  // Predicated region
  $region10: #{gpt_forward.30} parent=0 // pred_check
    _
  $region11: #{gpt_forward.30} parent=0 // pred_check_branch
    %13 = sbr.rel (0) target = $region13
  $region12: #{gpt_forward.30} parent=0 // pred_region
    _
  $region13: #{gpt_forward.30} parent=0 // pred_fallthru
    _
  %v14 = vld [vmem:[%s0] sm:$0x3]
  %vm15 = vcmask 254976
  %v16 = vsel %vm15, %v14, 0.0
  %17 = vadd.xlane.f32.xlu0 %v16
  %v18 = vpop.xlane.xlu0 %17
  %v19 = vrcp.pop 32.0
  %v20 = vmul.f32 32.0, %v19
  %v21 = vsub.f32 1.0, %v20
  %v22 = vmul.f32 %v19, %v21
  %v23 = vadd.f32 %v19, %v22
  %vm24 = vweird.f32 %v19
  %v25 = vsel %vm24, %v19, %v23
  %v26 = vmul.f32 %v18, %v25
  %v27 = vsub.f32 %v14, %v26
  %v28 = vmul.f32 %v27, %v27
  %v29 = vsel %vm15, %v28, 0.0
  %30 = vadd.xlane.f32.xlu0 %v29
  %v31 = vpop.xlane.xlu0 %30
  %v32 = vmul.f32 %v31, %v25
  %v33 = vadd.f32 %v32, 1e-05
  %v34 = vrsqrt.pop %v33
  %v35 = vmul.f32 %v34, %v33
  %v36 = vmul.f32 %v35, %v34
  %v37 = vmul.f32 0.5, %v36
  %v38 = vsub.f32 1.5, %v37
  %v39 = vmul.f32 %v34, %v38
  %vm40 = vweird.f32 %v33
  %vm41 = vweird.f32 %v34
  %vm42 = vmor %vm40, %vm41
  %v43 = vsel %vm42, %v34, %v39
  %v44 = vmul.f32 %v27, %v43
  %v45 = vld [vmem:[%s1] sm:$0x1]
  %v47 = vperm.slane %v45, 0
  %v49 = vmul.f32 %v44, %v47
  %v50 = vld [vmem:[%s2] sm:$0x1]
  %v52 = vperm.slane %v50, 0
  %v54 = vadd.f32 %v49, %v52
  %v55 = vpack.c.bf16 %v54, %v54
  %vm56 = vcmask 253952
  %57 = vst.msk [vmem:[%s3] sm:$0x1] %vm56, %v55
  // Predicated region
  $region14: #{gpt_forward.30} parent=0 // pred_check
    _
  $region15: #{gpt_forward.30} parent=0 // pred_check_branch
    %59 = sbr.rel (0) target = $region17
  $region16: #{gpt_forward.30} parent=0 // pred_region
    _
  $region17: #{gpt_forward.30} parent=0 // pred_fallthru
    _
  // Predicated region
  $region18: #{gpt_forward.30} parent=0 // pred_check
    _
  $region19: #{gpt_forward.30} parent=0 // pred_check_branch
    %61 = sbr.rel (0) target = $region21
  $region20: #{gpt_forward.30} parent=0 // pred_region
    _
  $region21: #{gpt_forward.30} parent=0 // pred_fallthru
    _

// kernel: gpt_forward.31
$region0: #{gpt_forward.31}
  #allocation0 [shape = 'u32[]', space=smem, size = 0x4, offset = 0x4, fixed_abs, tag = 'smem constant byte address 0x4 - core index']
  #allocation1 [shape = 'u32[72,128]{1,0:T(1,128)}', space=vmem, size = 0x9000, scoped, tag = 'internal scratch']
  %s0 = inlined_call_operand.vmem [shape: bf16[2,32], index: 0, kind: input, shape index: {}]
  %s1 = inlined_call_operand.vmem [shape: bf16[256,32], index: 1, kind: input, shape index: {}]
  %s2 = inlined_call_operand.vmem [shape: f32[2,256], index: 2, kind: output, shape index: {}]
  %s3 = sld [smem:[#allocation0]]
  $region18: #{gpt_forward.31} parent=0
    _
  %s5 = ssub.s32 1, %s3
  %s6 = scalar_select 0, %s5, %s3
  // Predicated region
  $region2: #{gpt_forward.31} parent=0 // pred_check
    _
  $region3: #{gpt_forward.31} parent=0 // pred_check_branch
    %8 = sbr.rel (0) target = $region5
  $region4: #{gpt_forward.31} parent=0 // pred_region
    _
  $region5: #{gpt_forward.31} parent=0 // pred_fallthru
    _
  // Predicated region
  $region6: #{gpt_forward.31} parent=0 // pred_check
    _
  $region7: #{gpt_forward.31} parent=0 // pred_check_branch
    %10 = sbr.rel (0) target = $region9
  $region8: #{gpt_forward.31} parent=0 // pred_region
    _
  $region9: #{gpt_forward.31} parent=0 // pred_fallthru
    _
  %v11 = vld [vmem:[%s0] sm:$0x1]
  %v12 = vld [vmem:[%s1] sm:$0xf]
  %v13 = vld [vmem:[%s1 + $0x4] sm:$0xf]
  %v14 = vld [vmem:[%s1 + $0x8] sm:$0xf]
  %v15 = vld [vmem:[%s1 + $0xc] sm:$0xf]
  %v16 = vld [vmem:[%s1 + $0x10] sm:$0xf]
  %v17 = vld [vmem:[%s1 + $0x14] sm:$0xf]
  %v18 = vld [vmem:[%s1 + $0x18] sm:$0xf]
  %v19 = vld [vmem:[%s1 + $0x1c] sm:$0xf]
  %v20 = vld [vmem:[%s1 + $0x20] sm:$0xf]
  %v21 = vld [vmem:[%s1 + $0x24] sm:$0xf]
  %v22 = vld [vmem:[%s1 + $0x28] sm:$0xf]
  %v23 = vld [vmem:[%s1 + $0x2c] sm:$0xf]
  %v24 = vld [vmem:[%s1 + $0x30] sm:$0xf]
  %v25 = vld [vmem:[%s1 + $0x34] sm:$0xf]
  %v26 = vld [vmem:[%s1 + $0x38] sm:$0xf]
  %v27 = vld [vmem:[%s1 + $0x3c] sm:$0xf]
  %v28 = vld [vmem:[%s1 + $0x40] sm:$0xf]
  %v29 = vld [vmem:[%s1 + $0x44] sm:$0xf]
  %v30 = vld [vmem:[%s1 + $0x48] sm:$0xf]
  %v31 = vld [vmem:[%s1 + $0x4c] sm:$0xf]
  %v32 = vld [vmem:[%s1 + $0x50] sm:$0xf]
  %v33 = vld [vmem:[%s1 + $0x54] sm:$0xf]
  %v34 = vld [vmem:[%s1 + $0x58] sm:$0xf]
  %v35 = vld [vmem:[%s1 + $0x5c] sm:$0xf]
  %v36 = vld [vmem:[%s1 + $0x60] sm:$0xf]
  %v37 = vld [vmem:[%s1 + $0x64] sm:$0xf]
  %v38 = vld [vmem:[%s1 + $0x68] sm:$0xf]
  %v39 = vld [vmem:[%s1 + $0x6c] sm:$0xf]
  %v40 = vld [vmem:[%s1 + $0x70] sm:$0xf]
  %v41 = vld [vmem:[%s1 + $0x74] sm:$0xf]
  %v42 = vld [vmem:[%s1 + $0x78] sm:$0xf]
  %v43 = vld [vmem:[%s1 + $0x7c] sm:$0xf]
  %v76 = vunpack.c.l.b16 %v12
  %v77 = vunpack.c.l.b16 %v13
  %v78 = vunpack.c.l.b16 %v14
  %v79 = vunpack.c.l.b16 %v15
  %v80 = vunpack.c.l.b16 %v16
  %v81 = vunpack.c.l.b16 %v17
  %v82 = vunpack.c.l.b16 %v18
  %v83 = vunpack.c.l.b16 %v19
  %v84 = vunpack.c.l.b16 %v20
  %v85 = vunpack.c.l.b16 %v21
  %v86 = vunpack.c.l.b16 %v22
  %v87 = vunpack.c.l.b16 %v23
  %v88 = vunpack.c.l.b16 %v24
  %v89 = vunpack.c.l.b16 %v25
  %v90 = vunpack.c.l.b16 %v26
  %v91 = vunpack.c.l.b16 %v27
  %v92 = vunpack.c.l.b16 %v28
  %v93 = vunpack.c.l.b16 %v29
  %v94 = vunpack.c.l.b16 %v30
  %v95 = vunpack.c.l.b16 %v31
  %v96 = vunpack.c.l.b16 %v32
  %v97 = vunpack.c.l.b16 %v33
  %v98 = vunpack.c.l.b16 %v34
  %v99 = vunpack.c.l.b16 %v35
  %v100 = vunpack.c.l.b16 %v36
  %v101 = vunpack.c.l.b16 %v37
  %v102 = vunpack.c.l.b16 %v38
  %v103 = vunpack.c.l.b16 %v39
  %v104 = vunpack.c.l.b16 %v40
  %v105 = vunpack.c.l.b16 %v41
  %v106 = vunpack.c.l.b16 %v42
  %v107 = vunpack.c.l.b16 %v43
  %v108 = vpack.c.b16 %v77, %v76
  %v109 = vpack.c.b16 %v79, %v78
  %v110 = vpack.c.b16 %v81, %v80
  %v111 = vpack.c.b16 %v83, %v82
  %v112 = vpack.c.b16 %v85, %v84
  %v113 = vpack.c.b16 %v87, %v86
  %v114 = vpack.c.b16 %v89, %v88
  %v115 = vpack.c.b16 %v91, %v90
  %v116 = vpack.c.b16 %v93, %v92
  %v117 = vpack.c.b16 %v95, %v94
  %v118 = vpack.c.b16 %v97, %v96
  %v119 = vpack.c.b16 %v99, %v98
  %v120 = vpack.c.b16 %v101, %v100
  %v121 = vpack.c.b16 %v103, %v102
  %v122 = vpack.c.b16 %v105, %v104
  %v123 = vpack.c.b16 %v107, %v106
  %vm124 = vcmask 261120
  %v126 = vsel %vm124, %v11, 0
  %v129 = vsel %vm124, %v108, 0
  %v132 = vsel %vm124, %v109, 0
  %v135 = vsel %vm124, %v110, 0
  %v138 = vsel %vm124, %v111, 0
  %v141 = vsel %vm124, %v112, 0
  %v144 = vsel %vm124, %v113, 0
  %v147 = vsel %vm124, %v114, 0
  %v150 = vsel %vm124, %v115, 0
  %v153 = vsel %vm124, %v116, 0
  %v156 = vsel %vm124, %v117, 0
  %v159 = vsel %vm124, %v118, 0
  %v162 = vsel %vm124, %v119, 0
  %v165 = vsel %vm124, %v120, 0
  %v168 = vsel %vm124, %v121, 0
  %v171 = vsel %vm124, %v122, 0
  %v174 = vsel %vm124, %v123, 0
  %176 = vmatpush.bf16.xpose.msra.mxu0 %v150
  %177 = vmatpush.bf16.xpose.msra.mxu0 %v147
  %178 = vmatpush.bf16.xpose.msra.mxu0 %v144
  %179 = vmatpush.bf16.xpose.msra.mxu0 %v141
  %180 = vmatpush.bf16.xpose.msra.mxu0 %v138
  %181 = vmatpush.bf16.xpose.msra.mxu0 %v135
  %182 = vmatpush.bf16.xpose.msra.mxu0 %v132
  %183 = vmatpush.bf16.xpose.msra.mxu0 %v129
  %184 = vmatmul.bf16.gmra.mxu0 %v126
  %v185 = vpop.f32.mrf.mxu0
  %v186 = vadd.f32 0.0, %v185
  %v187 = vpop.f32.mrf.mxu0
  %188 = vdwg.mxu0
  %189 = vmatpush.bf16.xpose.msra.mxu0 %v174
  %190 = vmatpush.bf16.xpose.msra.mxu0 %v171
  %191 = vmatpush.bf16.xpose.msra.mxu0 %v168
  %192 = vmatpush.bf16.xpose.msra.mxu0 %v165
  %193 = vmatpush.bf16.xpose.msra.mxu0 %v162
  %194 = vmatpush.bf16.xpose.msra.mxu0 %v159
  %195 = vmatpush.bf16.xpose.msra.mxu0 %v156
  %196 = vmatpush.bf16.xpose.msra.mxu0 %v153
  %197 = vmatmul.bf16.gmra.mxu0 %v126
  %v198 = vpop.f32.mrf.mxu0
  %v199 = vadd.f32 0.0, %v198
  %v200 = vpop.f32.mrf.mxu0
  %201 = vdwg.mxu0
  %v204 = vrot.slane %v199, 6
  %vm205 = vcmask 1041408
  %v206 = vsel %vm205, %v186, %v204
  %208 = vst [vmem:[%s2] sm:$0xf] %v206
  // Predicated region
  $region10: #{gpt_forward.31} parent=0 // pred_check
    _
  $region11: #{gpt_forward.31} parent=0 // pred_check_branch
    %210 = sbr.rel (0) target = $region13
  $region12: #{gpt_forward.31} parent=0 // pred_region
    _
  $region13: #{gpt_forward.31} parent=0 // pred_fallthru
    _
  // Predicated region
  $region14: #{gpt_forward.31} parent=0 // pred_check
    _
  $region15: #{gpt_forward.31} parent=0 // pred_check_branch
    %212 = sbr.rel (0) target = $region17
  $region16: #{gpt_forward.31} parent=0 // pred_region
    _
  $region17: #{gpt_forward.31} parent=0 // pred_fallthru
    _

</llo_original>
